<compile_context>
chip_gen: v7x
topology: tpu7x:2x2x1
jax: 0.10.0
libtpu: 0.0.40
codegen_flags: <defaults>
</compile_context>

<pallas_src>
import math

import jax
import jax.numpy as jnp
from jax.experimental import pallas as pl
from jax.experimental.pallas import tpu as pltpu


def _round_up(x, m):
    return ((x + m - 1) // m) * m


def _pick_tile(padded_dim, preferred=(512, 384, 256, 128)):
    # padded_dim is a multiple of 128, so this always returns >= 128.
    for t in preferred:
        if padded_dim % t == 0:
            return t
    return padded_dim


def bayesian_linear_kernel(x_ref, wmu_ref, wstd_ref, weps_ref,
                           bmu_ref, bstd_ref, beps_ref, o_ref, acc_ref):
    k = pl.program_id(1)

    @pl.when(k == 0)
    def _():
        acc_ref[...] = jnp.zeros_like(acc_ref)

    # Reparameterized weight sample: mu + std * eps.  Elementwise math in f32
    # (no bf16 VPU on v5e); cast to bf16 only for the MXU operands.
    w = (wmu_ref[...].astype(jnp.float32)
         + wstd_ref[...].astype(jnp.float32) * weps_ref[...].astype(jnp.float32))
    acc_ref[...] += jnp.dot(
        x_ref[...].astype(jnp.bfloat16),
        w.astype(jnp.bfloat16),
        preferred_element_type=jnp.float32,
    )

    @pl.when(k == pl.num_programs(1) - 1)
    def _():
        b = bmu_ref[...] + bstd_ref[...] * beps_ref[...]          # (1, TN) f32
        o_ref[...] = (acc_ref[...] + b).astype(o_ref.dtype)


def bayesian_linear(x, weight_mu, weight_std, bias_mu, bias_std,
                    weight_eps, bias_eps):
    """Sampled Bayesian linear: y = x @ (mu + std*eps) + (bmu + bstd*beps).

    x: (B, in_features) f32.
    weight_mu / weight_std / weight_eps: (in_features, out_features),
        preferably bf16 (the (in, out) layout feeds the MXU directly).
    bias_mu / bias_std / bias_eps: (out_features,).
    Returns (B, out_features) f32.
    """
    B, in_f = x.shape
    in_w, out_f = weight_mu.shape
    assert in_w == in_f, "weight params must be laid out (in_features, out_features)"

    in_p = _round_up(in_f, 128)
    out_p = _round_up(out_f, 128)
    tk = _pick_tile(in_p)
    tn = _pick_tile(out_p)

    # Zero-pad K/N to tile multiples (padded mu/std/eps are zero, so padded
    # sampled weights are exactly zero and contribute nothing to the matmul).
    if in_p != in_f:
        x = jnp.pad(x, ((0, 0), (0, in_p - in_f)))
    if (in_p != in_f) or (out_p != out_f):
        pad_w = ((0, in_p - in_f), (0, out_p - out_f))
        weight_mu = jnp.pad(weight_mu, pad_w)
        weight_std = jnp.pad(weight_std, pad_w)
        weight_eps = jnp.pad(weight_eps, pad_w)
    if out_p != out_f:
        pad_b = (0, out_p - out_f)
        bias_mu = jnp.pad(bias_mu, pad_b)
        bias_std = jnp.pad(bias_std, pad_b)
        bias_eps = jnp.pad(bias_eps, pad_b)

    x = x.astype(jnp.float32)
    bmu2 = bias_mu.reshape(1, out_p).astype(jnp.float32)
    bstd2 = bias_std.reshape(1, out_p).astype(jnp.float32)
    beps2 = bias_eps.reshape(1, out_p).astype(jnp.float32)

    n_tiles, k_tiles = out_p // tn, in_p // tk

    grid_spec = pltpu.PrefetchScalarGridSpec(
        num_scalar_prefetch=0,
        grid=(n_tiles, k_tiles),                  # reduction (K) axis innermost
        in_specs=[
            pl.BlockSpec((B, tk), lambda j, k: (0, k)),     # x
            pl.BlockSpec((tk, tn), lambda j, k: (k, j)),    # weight_mu
            pl.BlockSpec((tk, tn), lambda j, k: (k, j)),    # weight_std
            pl.BlockSpec((tk, tn), lambda j, k: (k, j)),    # weight_eps
            pl.BlockSpec((1, tn), lambda j, k: (0, j)),     # bias_mu
            pl.BlockSpec((1, tn), lambda j, k: (0, j)),     # bias_std
            pl.BlockSpec((1, tn), lambda j, k: (0, j)),     # bias_eps
        ],
        out_specs=pl.BlockSpec((B, tn), lambda j, k: (0, j)),
        scratch_shapes=[pltpu.VMEM((B, tn), jnp.float32)],
    )

    out = pl.pallas_call(
        bayesian_linear_kernel,
        out_shape=jax.ShapeDtypeStruct((B, out_p), jnp.float32),
        grid_spec=grid_spec,
        compiler_params=pltpu.CompilerParams(
            dimension_semantics=("parallel", "arbitrary"),
            vmem_limit_bytes=48 * 1024 * 1024,
        ),
    )(x, weight_mu, weight_std, weight_eps, bmu2, bstd2, beps2)

    return out[:, :out_f] if out_p != out_f else out


def init_params(key, in_features, out_features, posterior_std_init=0.1):
    """Matches the PyTorch init, but stores the weight params transposed to
    (in_features, out_features) so the kernel never has to relayout tiles."""
    gain = 0.5
    bound = gain * math.sqrt(6.0 / (in_features + out_features))
    weight_mu = jax.random.uniform(
        key, (in_features, out_features), jnp.float32, -bound, bound)
    weight_log_std = jnp.full((in_features, out_features),
                              math.log(posterior_std_init), jnp.float32)
    bias_mu = jnp.zeros((out_features,), jnp.float32)
    bias_log_std = jnp.full((out_features,),
                            math.log(posterior_std_init), jnp.float32)
    return weight_mu, weight_log_std, bias_mu, bias_log_std


if __name__ == "__main__":
    key = jax.random.PRNGKey(0)
    k_init, k_x, k_weps, k_beps = jax.random.split(key, 4)

    # Small but lane-dense / multi-tile config: grid = (2 N-tiles, 2 K-tiles).
    B, in_features, out_features = 8, 768, 1024

    weight_mu, weight_log_std, bias_mu, bias_log_std = init_params(
        k_init, in_features, out_features)

    # Hoist exp(log_std): recompute std only when the parameters change, and
    # store the weight-sized streams in bf16 (halves HBM traffic into kernel).
    weight_std = jnp.exp(weight_log_std)
    bias_std = jnp.exp(bias_log_std)
    wmu_b = weight_mu.astype(jnp.bfloat16)
    wstd_b = weight_std.astype(jnp.bfloat16)

    x = jax.random.normal(k_x, (B, in_features), jnp.float32)

    # Reparameterization noise (torch.randn_like equivalents), stored bf16.
    weight_eps = jax.random.normal(
        k_weps, (in_features, out_features), jnp.float32).astype(jnp.bfloat16)
    bias_eps = jax.random.normal(k_beps, (out_features,), jnp.float32)

    out = bayesian_linear(x, wmu_b, wstd_b, bias_mu, bias_std,
                          weight_eps, bias_eps)
    jax.block_until_ready(out)
    assert out.shape == (B, out_features)

    # Pure-JAX reference emulating the kernel's numerics exactly
    # (reparameterization in f32, bf16 MXU operands, f32 accumulation).
    w_sample = (wmu_b.astype(jnp.float32)
                + wstd_b.astype(jnp.float32) * weight_eps.astype(jnp.float32)
                ).astype(jnp.bfloat16)
    b_sample = bias_mu + bias_std * bias_eps
    ref = jnp.dot(x.astype(jnp.bfloat16), w_sample,
                  preferred_element_type=jnp.float32) + b_sample

    assert jnp.allclose(out, ref, atol=1e-2, rtol=1e-2), (
        float(jnp.max(jnp.abs(out - ref))))

    print("KERNEL_OK")
</pallas_src>

<mosaic_0001>
module attributes {stable_mosaic.version = 11 : i64} {
  func.func @bayesian_linear_kernel(%arg0: i32, %arg1: i32, %arg2: memref<8x384xf32, #tpu.memory_space<vmem>>, %arg3: memref<384x512xbf16, #tpu.memory_space<vmem>>, %arg4: memref<384x512xbf16, #tpu.memory_space<vmem>>, %arg5: memref<384x512xbf16, #tpu.memory_space<vmem>>, %arg6: memref<1x512xf32, #tpu.memory_space<vmem>>, %arg7: memref<1x512xf32, #tpu.memory_space<vmem>>, %arg8: memref<1x512xf32, #tpu.memory_space<vmem>>, %arg9: memref<8x512xf32, #tpu.memory_space<vmem>>, %arg10: memref<8x512xf32, #tpu.memory_space<vmem>>) attributes {dimension_semantics = [#tpu.dimension_semantics<parallel>, #tpu.dimension_semantics<arbitrary>], iteration_bounds = array<i64: 2, 2>, scalar_prefetch = 0 : i64, scratch_operands = 1 : i64, tpu.core_type = #tpu.core_type<tc>, window_params = [{transform_indices = @transform_0, window_bounds = array<i64: 8, 384>}, {transform_indices = @transform_1, window_bounds = array<i64: 384, 512>}, {transform_indices = @transform_2, window_bounds = array<i64: 384, 512>}, {transform_indices = @transform_3, window_bounds = array<i64: 384, 512>}, {transform_indices = @transform_4, window_bounds = array<i64: 1, 512>}, {transform_indices = @transform_5, window_bounds = array<i64: 1, 512>}, {transform_indices = @transform_6, window_bounds = array<i64: 1, 512>}, {transform_indices = @transform_7, window_bounds = array<i64: 8, 512>}]} {
    %c0_i32 = arith.constant 0 : i32
    %0 = arith.cmpi eq, %arg1, %c0_i32 : i32
    %1 = arith.extui %0 : i1 to i32
    %c0_i32_0 = arith.constant 0 : i32
    %2 = arith.cmpi ne, %1, %c0_i32_0 : i32
    scf.if %2 {
      %cst_13 = arith.constant 0.000000e+00 : f32
      %21 = vector.broadcast %cst_13 : f32 to vector<8x512xf32>
      %c0_14 = arith.constant 0 : index
      %c0_15 = arith.constant 0 : index
      %22 = vector.load %arg10[%c0_14, %c0_15] : memref<8x512xf32, #tpu.memory_space<vmem>>, vector<8x512xf32>
      tpu.vector_store %arg10[%c0_14, %c0_15], %21 {strides = array<i32>} : memref<8x512xf32, #tpu.memory_space<vmem>>, vector<8x512xf32>,
    } else {
    }
    %c0 = arith.constant 0 : index
    %c0_1 = arith.constant 0 : index
    %3 = vector.load %arg3[%c0, %c0_1] : memref<384x512xbf16, #tpu.memory_space<vmem>>, vector<384x512xbf16>
    %4 = arith.extf %3 : vector<384x512xbf16> to vector<384x512xf32>
    %c0_2 = arith.constant 0 : index
    %c0_3 = arith.constant 0 : index
    %5 = vector.load %arg4[%c0_2, %c0_3] : memref<384x512xbf16, #tpu.memory_space<vmem>>, vector<384x512xbf16>
    %6 = arith.extf %5 : vector<384x512xbf16> to vector<384x512xf32>
    %c0_4 = arith.constant 0 : index
    %c0_5 = arith.constant 0 : index
    %7 = vector.load %arg5[%c0_4, %c0_5] : memref<384x512xbf16, #tpu.memory_space<vmem>>, vector<384x512xbf16>
    %8 = arith.extf %7 : vector<384x512xbf16> to vector<384x512xf32>
    %9 = arith.mulf %6, %8 : vector<384x512xf32>
    %10 = arith.addf %4, %9 : vector<384x512xf32>
    %c0_6 = arith.constant 0 : index
    %c0_7 = arith.constant 0 : index
    %11 = vector.load %arg10[%c0_6, %c0_7] : memref<8x512xf32, #tpu.memory_space<vmem>>, vector<8x512xf32>
    %c0_8 = arith.constant 0 : index
    %c0_9 = arith.constant 0 : index
    %12 = vector.load %arg2[%c0_8, %c0_9] : memref<8x384xf32, #tpu.memory_space<vmem>>, vector<8x384xf32>
    %13 = arith.truncf %12 : vector<8x384xf32> to vector<8x384xbf16>
    %14 = arith.truncf %10 : vector<384x512xf32> to vector<384x512xbf16>
    %cst = arith.constant dense<0.000000e+00> : vector<8x512xf32>
    %15 = tpu.matmul %13, %14, %cst {dimension_numbers = #tpu.dot_dimension_numbers<[1], [0], [0], [1], [0, 0, 1, 1], [], []>} : vector<8x384xbf16>, vector<384x512xbf16>, vector<8x512xf32> -> vector<8x512xf32>
    %16 = arith.addf %11, %15 : vector<8x512xf32>
    %c0_10 = arith.constant 0 : index
    %c0_11 = arith.constant 0 : index
    %17 = vector.load %arg10[%c0_10, %c0_11] : memref<8x512xf32, #tpu.memory_space<vmem>>, vector<8x512xf32>
    tpu.vector_store %arg10[%c0_10, %c0_11], %16 {strides = array<i32>} : memref<8x512xf32, #tpu.memory_space<vmem>>, vector<8x512xf32>,
    %c1_i32 = arith.constant 1 : i32
    %18 = arith.cmpi eq, %arg1, %c1_i32 : i32
    %19 = arith.extui %18 : i1 to i32
    %c0_i32_12 = arith.constant 0 : i32
    %20 = arith.cmpi ne, %19, %c0_i32_12 : i32
    scf.if %20 {
      %c0_13 = arith.constant 0 : index
      %c0_14 = arith.constant 0 : index
      %21 = vector.load %arg6[%c0_13, %c0_14] : memref<1x512xf32, #tpu.memory_space<vmem>>, vector<1x512xf32>
      %c0_15 = arith.constant 0 : index
      %c0_16 = arith.constant 0 : index
      %22 = vector.load %arg7[%c0_15, %c0_16] : memref<1x512xf32, #tpu.memory_space<vmem>>, vector<1x512xf32>
      %c0_17 = arith.constant 0 : index
      %c0_18 = arith.constant 0 : index
      %23 = vector.load %arg8[%c0_17, %c0_18] : memref<1x512xf32, #tpu.memory_space<vmem>>, vector<1x512xf32>
      %24 = arith.mulf %22, %23 : vector<1x512xf32>
      %25 = arith.addf %21, %24 : vector<1x512xf32>
      %c0_19 = arith.constant 0 : index
      %c0_20 = arith.constant 0 : index
      %26 = vector.load %arg10[%c0_19, %c0_20] : memref<8x512xf32, #tpu.memory_space<vmem>>, vector<8x512xf32>
      %27 = vector.broadcast %25 : vector<1x512xf32> to vector<8x512xf32>
      %28 = arith.addf %26, %27 : vector<8x512xf32>
      %c0_21 = arith.constant 0 : index
      %c0_22 = arith.constant 0 : index
      %29 = vector.load %arg9[%c0_21, %c0_22] : memref<8x512xf32, #tpu.memory_space<vmem>>, vector<8x512xf32>
      tpu.vector_store %arg9[%c0_21, %c0_22], %28 {strides = array<i32>} : memref<8x512xf32, #tpu.memory_space<vmem>>, vector<8x512xf32>,
    } else {
    }
    return
  }
  func.func @transform_0(%arg0: i32, %arg1: i32) -> (i32, i32) {
    %c0_i32 = arith.constant 0 : i32
    %c0_i32_0 = arith.constant 0 : i32
    return %c0_i32, %arg1 : i32, i32
  }
  func.func @transform_1(%arg0: i32, %arg1: i32) -> (i32, i32) {
    %c0_i32 = arith.constant 0 : i32
    return %arg1, %arg0 : i32, i32
  }
  func.func @transform_2(%arg0: i32, %arg1: i32) -> (i32, i32) {
    %c0_i32 = arith.constant 0 : i32
    return %arg1, %arg0 : i32, i32
  }
  func.func @transform_3(%arg0: i32, %arg1: i32) -> (i32, i32) {
    %c0_i32 = arith.constant 0 : i32
    return %arg1, %arg0 : i32, i32
  }
  func.func @transform_4(%arg0: i32, %arg1: i32) -> (i32, i32) {
    %c0_i32 = arith.constant 0 : i32
    %c0_i32_0 = arith.constant 0 : i32
    return %c0_i32, %arg0 : i32, i32
  }
  func.func @transform_5(%arg0: i32, %arg1: i32) -> (i32, i32) {
    %c0_i32 = arith.constant 0 : i32
    %c0_i32_0 = arith.constant 0 : i32
    return %c0_i32, %arg0 : i32, i32
  }
  func.func @transform_6(%arg0: i32, %arg1: i32) -> (i32, i32) {
    %c0_i32 = arith.constant 0 : i32
    %c0_i32_0 = arith.constant 0 : i32
    return %c0_i32, %arg0 : i32, i32
  }
  func.func @transform_7(%arg0: i32, %arg1: i32) -> (i32, i32) {
    %c0_i32 = arith.constant 0 : i32
    %c0_i32_0 = arith.constant 0 : i32
    return %c0_i32, %arg0 : i32, i32
  }
}

</mosaic_0001>

<llo_original>
// kernel: tpu_custom_call.1
$region0: #{tpu_custom_call.1}
  #allocation0 [shape = 'u32[]', space=smem, size = 0x4, offset = 0x4, fixed_abs, tag = 'smem constant byte address 0x4 - core index']
  #allocation1 [shape = 'u32[144,128]{1,0:T(1,128)}', space=vmem, size = 0x12000, scoped, tag = 'internal scratch']
  #allocation2 [shape = 'f32[8,512]{1,0:T(8,128)}', space=vmem, size = 0x4000, scoped, tag = 'scratch operand']
  %s0 = inlined_call_operand.hbm [shape: f32[8,768], index: 0, kind: input, shape index: {}]
  %s1 = inlined_call_operand.hbm [shape: bf16[768,1024], index: 1, kind: input, shape index: {}]
  %s2 = inlined_call_operand.hbm [shape: bf16[768,1024], index: 2, kind: input, shape index: {}]
  %s3 = inlined_call_operand.hbm [shape: bf16[768,1024], index: 3, kind: input, shape index: {}]
  %s4 = inlined_call_operand.hbm [shape: f32[1,1024], index: 4, kind: input, shape index: {}]
  %s5 = inlined_call_operand.hbm [shape: f32[1,1024], index: 5, kind: input, shape index: {}]
  %s6 = inlined_call_operand.hbm [shape: f32[1,1024], index: 6, kind: input, shape index: {}]
  %s7 = inlined_call_operand.hbm [shape: f32[8,1024], index: 7, kind: output, shape index: {}]
  %s8 = sld [smem:[#allocation0]]
  $region97: #{tpu_custom_call.1} parent=0
    _
  %s10 = ssub.s32 1, %s8
  %s11 = scalar_select 0, %s10, %s8
  $region1: #{tpu_custom_call.1} parent=0
    #allocation3 [shape = 'u8[24576]{0}', space=vmem, size = 0x6000, scoped, tag = 'input window, operand 0']
    #allocation4 [shape = 's32[2]{0}', space=sflag, size = 0x8, scoped, tag = 'scoped memory for tpu_custom_call.1']
    #allocation5 [shape = 's32[2]{0}', space=sflag, size = 0x8, scoped, tag = 'scoped memory for tpu_custom_call.1']
    #allocation6 [shape = 'u8[786432]{0}', space=vmem, size = 0xc0000, scoped, tag = 'input window, operand 1']
    #allocation7 [shape = 's32[2]{0}', space=sflag, size = 0x8, scoped, tag = 'scoped memory for tpu_custom_call.1']
    #allocation8 [shape = 'u8[786432]{0}', space=vmem, size = 0xc0000, scoped, tag = 'input window, operand 2']
    #allocation9 [shape = 'u8[786432]{0}', space=vmem, size = 0xc0000, scoped, tag = 'input window, operand 3']
    #allocation10 [shape = 's32[2]{0}', space=sflag, size = 0x8, scoped, tag = 'scoped memory for tpu_custom_call.1']
    #allocation11 [shape = 'u8[4096]{0}', space=vmem, size = 0x1000, scoped, tag = 'input window, operand 4']
    #allocation12 [shape = 'u8[4096]{0}', space=vmem, size = 0x1000, scoped, tag = 'input window, operand 5']
    #allocation13 [shape = 's32[2]{0}', space=sflag, size = 0x8, scoped, tag = 'scoped memory for tpu_custom_call.1']
    #allocation14 [shape = 'u8[4096]{0}', space=vmem, size = 0x1000, scoped, tag = 'input window, operand 6']
    #allocation15 [shape = 'u8[32768]{0}', space=vmem, size = 0x8000, scoped, tag = 'output window, operand 0']
    %12 = vsyncpa [#allocation4], 0
    %s13 = scalar_lea.sflag [#allocation4], 1
    %14 = vsyncpa %s13, 0
    %15 = vsyncpa [#allocation7], 0
    %s16 = scalar_lea.sflag [#allocation7], 1
    %17 = vsyncpa %s16, 0
    %18 = vsyncpa [#allocation10], 0
    %s19 = scalar_lea.sflag [#allocation10], 1
    %20 = vsyncpa %s19, 0
    %21 = vsyncpa [#allocation13], 0
    %s22 = scalar_lea.sflag [#allocation13], 1
    %23 = vsyncpa %s22, 0
    %24 = vsyncpa [#allocation5], 0
    %s25 = scalar_lea.sflag [#allocation5], 1
    %26 = vsyncpa %s25, 0
    loop: start=0, step=1, limit=6
    $region2: #{tpu_custom_call.1} parent=1 // loop_pre_header
      _
    $region3: #{tpu_custom_call.1} parent=1 // loop_header
      %s28 = sphi 0, %s32
      %p29 = scmp.ge.s32.totalorder %s28, 6
      %s35 = sphi 0, %s47
      %s36 = sphi 0, %s43
      %s37 = sphi 0, %s35
      %s38 = sphi 0, %s36
      %s39 = sphi 0, %s37
      %s40 = sphi 0, %s38
      %s50 = sphi 0, %s52
      %s53 = sphi 0, %s50
      %s54 = sphi 0, %s53
      %s70 = sphi 0, %s54
      %s78 = sphi 0, %s80
      %s81 = sphi 0, %s78
      %s82 = sphi 0, %s81
      %s98 = sphi 0, %s82
      %s106 = sphi 0, %s108
      %s109 = sphi 0, %s106
      %s110 = sphi 0, %s109
      %s126 = sphi 0, %s110
      %s134 = sphi 0, %s136
      %s137 = sphi 0, %s134
      %s138 = sphi 0, %s137
      %s154 = sphi 0, %s138
      %s160 = sphi 0, %s162
      %s163 = sphi 0, %s160
      %s164 = sphi 0, %s163
      %s180 = sphi 0, %s164
      %s186 = sphi 0, %s188
      %s189 = sphi 0, %s186
      %s190 = sphi 0, %s189
      %s206 = sphi 0, %s190
      %s212 = sphi 0, %s214
      %s215 = sphi 0, %s212
      %s216 = sphi 0, %s215
      %s232 = sphi 0, %s216
      %s238 = sphi 0, %s240
      %s241 = sphi 0, %s238
      %s242 = sphi 0, %s241
      %s258 = sphi 0, %s242
    $region4: #{tpu_custom_call.1} parent=1 // loop_header_branch
      %31 = sbr.rel (%p29) target = $region8
    $region5: #{tpu_custom_call.1} parent=1 // loop_body
      %s33 = ssub.s32 %s28, 1
      %s34 = ssub.s32 %s28, 2
      %s41 = sadd.s32 1, %s36
      %p42 = scmp.ge.s32.totalorder %s41, 2
      %s43 = scalar_select %p42, 0, %s41
      %s44 = sadd.s32 1, %s35
      %s45 = scalar_select %p42, %s44, %s35
      %p46 = scmp.ge.s32.totalorder %s45, 2
      %s47 = scalar_select %p46, 0, %s45
      %s48 = ssub.s32 %s36, %s43
      %p49 = scmp.eq.s32.totalorder %s48, 0
      %s51 = sadd.s32 %s50, 1
      %s52 = scalar_select %p49, %s50, %s51
      %p55 = pneg %p49
      %p56 = scmp.eq.s32.totalorder %s28, 3
      %p57 = por %p55, %p56
      %p58 = scmp.ne.s32.totalorder %s50, %s53
      %p59 = scmp.eq.s32.totalorder %s28, 0
      %p60 = por %p58, %p59
      %p61 = scmp.ne.s32.totalorder %s50, %s53
      %p62 = scmp.eq.s32.totalorder %s33, 3
      %p63 = por %p61, %p62
      %p64 = scmp.ne.s32.totalorder %s53, %s54
      %p65 = scmp.eq.s32.totalorder %s33, 0
      %p66 = por %p64, %p65
      %p67 = scmp.ne.s32.totalorder %s53, %s54
      %p68 = scmp.eq.s32.totalorder %s34, 3
      %p69 = por %p67, %p68
      %p71 = scmp.ne.s32.totalorder %s54, %s70
      %p72 = scmp.eq.s32.totalorder %s34, 0
      %p73 = por %p71, %p72
      %s74 = ssub.s32 %s36, %s43
      %s75 = ssub.s32 %s35, %s47
      %s76 = sor.u32 %s74, %s75
      %p77 = scmp.eq.s32.totalorder %s76, 0
      %s79 = sadd.s32 %s78, 1
      %s80 = scalar_select %p77, %s78, %s79
      %p83 = pneg %p77
      %p84 = scmp.eq.s32.totalorder %s28, 3
      %p85 = por %p83, %p84
      %p86 = scmp.ne.s32.totalorder %s78, %s81
      %p87 = scmp.eq.s32.totalorder %s28, 0
      %p88 = por %p86, %p87
      %p89 = scmp.ne.s32.totalorder %s78, %s81
      %p90 = scmp.eq.s32.totalorder %s33, 3
      %p91 = por %p89, %p90
      %p92 = scmp.ne.s32.totalorder %s81, %s82
      %p93 = scmp.eq.s32.totalorder %s33, 0
      %p94 = por %p92, %p93
      %p95 = scmp.ne.s32.totalorder %s81, %s82
      %p96 = scmp.eq.s32.totalorder %s34, 3
      %p97 = por %p95, %p96
      %p99 = scmp.ne.s32.totalorder %s82, %s98
      %p100 = scmp.eq.s32.totalorder %s34, 0
      %p101 = por %p99, %p100
      %s102 = ssub.s32 %s36, %s43
      %s103 = ssub.s32 %s35, %s47
      %s104 = sor.u32 %s102, %s103
      %p105 = scmp.eq.s32.totalorder %s104, 0
      %s107 = sadd.s32 %s106, 1
      %s108 = scalar_select %p105, %s106, %s107
      %p111 = pneg %p105
      %p112 = scmp.eq.s32.totalorder %s28, 3
      %p113 = por %p111, %p112
      %p114 = scmp.ne.s32.totalorder %s106, %s109
      %p115 = scmp.eq.s32.totalorder %s28, 0
      %p116 = por %p114, %p115
      %p117 = scmp.ne.s32.totalorder %s106, %s109
      %p118 = scmp.eq.s32.totalorder %s33, 3
      %p119 = por %p117, %p118
      %p120 = scmp.ne.s32.totalorder %s109, %s110
      %p121 = scmp.eq.s32.totalorder %s33, 0
      %p122 = por %p120, %p121
      %p123 = scmp.ne.s32.totalorder %s109, %s110
      %p124 = scmp.eq.s32.totalorder %s34, 3
      %p125 = por %p123, %p124
      %p127 = scmp.ne.s32.totalorder %s110, %s126
      %p128 = scmp.eq.s32.totalorder %s34, 0
      %p129 = por %p127, %p128
      %s130 = ssub.s32 %s36, %s43
      %s131 = ssub.s32 %s35, %s47
      %s132 = sor.u32 %s130, %s131
      %p133 = scmp.eq.s32.totalorder %s132, 0
      %s135 = sadd.s32 %s134, 1
      %s136 = scalar_select %p133, %s134, %s135
      %p139 = pneg %p133
      %p140 = scmp.eq.s32.totalorder %s28, 3
      %p141 = por %p139, %p140
      %p142 = scmp.ne.s32.totalorder %s134, %s137
      %p143 = scmp.eq.s32.totalorder %s28, 0
      %p144 = por %p142, %p143
      %p145 = scmp.ne.s32.totalorder %s134, %s137
      %p146 = scmp.eq.s32.totalorder %s33, 3
      %p147 = por %p145, %p146
      %p148 = scmp.ne.s32.totalorder %s137, %s138
      %p149 = scmp.eq.s32.totalorder %s33, 0
      %p150 = por %p148, %p149
      %p151 = scmp.ne.s32.totalorder %s137, %s138
      %p152 = scmp.eq.s32.totalorder %s34, 3
      %p153 = por %p151, %p152
      %p155 = scmp.ne.s32.totalorder %s138, %s154
      %p156 = scmp.eq.s32.totalorder %s34, 0
      %p157 = por %p155, %p156
      %s158 = ssub.s32 %s35, %s47
      %p159 = scmp.eq.s32.totalorder %s158, 0
      %s161 = sadd.s32 %s160, 1
      %s162 = scalar_select %p159, %s160, %s161
      %p165 = pneg %p159
      %p166 = scmp.eq.s32.totalorder %s28, 3
      %p167 = por %p165, %p166
      %p168 = scmp.ne.s32.totalorder %s160, %s163
      %p169 = scmp.eq.s32.totalorder %s28, 0
      %p170 = por %p168, %p169
      %p171 = scmp.ne.s32.totalorder %s160, %s163
      %p172 = scmp.eq.s32.totalorder %s33, 3
      %p173 = por %p171, %p172
      %p174 = scmp.ne.s32.totalorder %s163, %s164
      %p175 = scmp.eq.s32.totalorder %s33, 0
      %p176 = por %p174, %p175
      %p177 = scmp.ne.s32.totalorder %s163, %s164
      %p178 = scmp.eq.s32.totalorder %s34, 3
      %p179 = por %p177, %p178
      %p181 = scmp.ne.s32.totalorder %s164, %s180
      %p182 = scmp.eq.s32.totalorder %s34, 0
      %p183 = por %p181, %p182
      %s184 = ssub.s32 %s35, %s47
      %p185 = scmp.eq.s32.totalorder %s184, 0
      %s187 = sadd.s32 %s186, 1
      %s188 = scalar_select %p185, %s186, %s187
      %p191 = pneg %p185
      %p192 = scmp.eq.s32.totalorder %s28, 3
      %p193 = por %p191, %p192
      %p194 = scmp.ne.s32.totalorder %s186, %s189
      %p195 = scmp.eq.s32.totalorder %s28, 0
      %p196 = por %p194, %p195
      %p197 = scmp.ne.s32.totalorder %s186, %s189
      %p198 = scmp.eq.s32.totalorder %s33, 3
      %p199 = por %p197, %p198
      %p200 = scmp.ne.s32.totalorder %s189, %s190
      %p201 = scmp.eq.s32.totalorder %s33, 0
      %p202 = por %p200, %p201
      %p203 = scmp.ne.s32.totalorder %s189, %s190
      %p204 = scmp.eq.s32.totalorder %s34, 3
      %p205 = por %p203, %p204
      %p207 = scmp.ne.s32.totalorder %s190, %s206
      %p208 = scmp.eq.s32.totalorder %s34, 0
      %p209 = por %p207, %p208
      %s210 = ssub.s32 %s35, %s47
      %p211 = scmp.eq.s32.totalorder %s210, 0
      %s213 = sadd.s32 %s212, 1
      %s214 = scalar_select %p211, %s212, %s213
      %p217 = pneg %p211
      %p218 = scmp.eq.s32.totalorder %s28, 3
      %p219 = por %p217, %p218
      %p220 = scmp.ne.s32.totalorder %s212, %s215
      %p221 = scmp.eq.s32.totalorder %s28, 0
      %p222 = por %p220, %p221
      %p223 = scmp.ne.s32.totalorder %s212, %s215
      %p224 = scmp.eq.s32.totalorder %s33, 3
      %p225 = por %p223, %p224
      %p226 = scmp.ne.s32.totalorder %s215, %s216
      %p227 = scmp.eq.s32.totalorder %s33, 0
      %p228 = por %p226, %p227
      %p229 = scmp.ne.s32.totalorder %s215, %s216
      %p230 = scmp.eq.s32.totalorder %s34, 3
      %p231 = por %p229, %p230
      %p233 = scmp.ne.s32.totalorder %s216, %s232
      %p234 = scmp.eq.s32.totalorder %s34, 0
      %p235 = por %p233, %p234
      %s236 = ssub.s32 %s35, %s47
      %p237 = scmp.eq.s32.totalorder %s236, 0
      %s239 = sadd.s32 %s238, 1
      %s240 = scalar_select %p237, %s238, %s239
      %p243 = pneg %p237
      %p244 = scmp.eq.s32.totalorder %s28, 3
      %p245 = por %p243, %p244
      %p246 = scmp.ne.s32.totalorder %s238, %s241
      %p247 = scmp.eq.s32.totalorder %s28, 0
      %p248 = por %p246, %p247
      %p249 = scmp.ne.s32.totalorder %s238, %s241
      %p250 = scmp.eq.s32.totalorder %s33, 3
      %p251 = por %p249, %p250
      %p252 = scmp.ne.s32.totalorder %s241, %s242
      %p253 = scmp.eq.s32.totalorder %s33, 0
      %p254 = por %p252, %p253
      %p255 = scmp.ne.s32.totalorder %s241, %s242
      %p256 = scmp.eq.s32.totalorder %s34, 3
      %p257 = por %p255, %p256
      %p259 = scmp.ne.s32.totalorder %s242, %s258
      %p260 = scmp.eq.s32.totalorder %s34, 0
      %p261 = por %p259, %p260
      %p262 = scmp.le.s32.totalorder 1, %s28
      %p263 = scmp.lt.s32.totalorder %s28, 5
      %p264 = pnand %p262, %p263
      %p265 = pneg %p264
      // Predicated region
      $region9: #{tpu_custom_call.1} parent=5 // pred_check
        _
      $region10: #{tpu_custom_call.1} parent=5 // pred_check_branch
        %267 = sbr.rel (%p264) target = $region12
      $region11: #{tpu_custom_call.1} parent=5 // pred_region
        %s268 = ssub.s32 %s28, 1
      $region12: #{tpu_custom_call.1} parent=5 // pred_fallthru
        _
      %p269 = scmp.lt.s32.totalorder %s28, 4
      // Predicated region
      $region13: #{tpu_custom_call.1} parent=5 // pred_check
        %p270 = pneg %p269
      $region14: #{tpu_custom_call.1} parent=5 // pred_check_branch
        %272 = sbr.rel (%p270) target = $region16
      $region15: #{tpu_custom_call.1} parent=5 // pred_region
        // Predicated region
        $region17: #{tpu_custom_call.1} parent=15 // pred_check
          %p273 = pneg %p60
        $region18: #{tpu_custom_call.1} parent=15 // pred_check_branch
          %275 = sbr.rel (%p273) target = $region20
        $region19: #{tpu_custom_call.1} parent=15 // pred_region
          %s276 = sand.u32 %s50, 1
          %s277 = scalar_lea.sflag [#allocation4], %s276
          %s278 = sand.u32 %s50, 1
          %s279 = smul.addr %s278, 24
          %s280 = scalar_lea.vmem [#allocation3], %s279
          %s281 = smul.u32 3, %s36
          %s283 = ssub.s32 384, 384
          %284 = vsyncadd %s277, %s283
          %s285 = smul.addr %s281, 128
          %s286 = scalar_lea.hbm %s0, %s285
          %s288 = sshll.u32 %s280, 4
          %s289 = int_to_ptr.vmem [resolvable:$true] %s288
          %291 = dma.hbm_to_vmem [thread:$0]  %s286, 384, %s289, %s277
        $region20: #{tpu_custom_call.1} parent=15 // pred_fallthru
          _
        // Predicated region
        $region21: #{tpu_custom_call.1} parent=15 // pred_check
          %p292 = pneg %p88
        $region22: #{tpu_custom_call.1} parent=15 // pred_check_branch
          %294 = sbr.rel (%p292) target = $region24
        $region23: #{tpu_custom_call.1} parent=15 // pred_region
          %s295 = sand.u32 %s28, 1
          %s296 = scalar_lea.sflag [#allocation7], %s295
          %s297 = sand.u32 %s78, 1
          %s298 = smul.addr %s297, 768
          %s299 = scalar_lea.vmem [#allocation6], %s298
          %s300 = smul.u32 48, %s36
          %s301 = smul.u32 4, %s35
          %s303 = ssub.s32 12288, 12288
          %304 = vsyncadd %s296, %s303
          %s305 = smul.addr %s300, 8
          %s306 = sadd.s32 %s301, %s305
          %s307 = smul.addr %s306, 64
          %s308 = scalar_lea.hbm %s1, %s307
          %s309 = sshll.u32 %s299, 4
          %s310 = int_to_ptr.vmem [resolvable:$true] %s309
          %315 = dma.hbm_to_vmem [thread:$0]  %s308, 12288, %s310, %s296, 512, 256, 16
        $region24: #{tpu_custom_call.1} parent=15 // pred_fallthru
          _
        // Predicated region
        $region25: #{tpu_custom_call.1} parent=15 // pred_check
          %p316 = pneg %p116
        $region26: #{tpu_custom_call.1} parent=15 // pred_check_branch
          %318 = sbr.rel (%p316) target = $region28
        $region27: #{tpu_custom_call.1} parent=15 // pred_region
          %s319 = sand.u32 %s28, 1
          %s320 = scalar_lea.sflag [#allocation7], %s319
          %s321 = sand.u32 %s106, 1
          %s322 = smul.addr %s321, 768
          %s323 = scalar_lea.vmem [#allocation8], %s322
          %s324 = smul.u32 48, %s36
          %s325 = smul.u32 4, %s35
          %s327 = ssub.s32 12288, 12288
          %328 = vsyncadd %s320, %s327
          %s329 = smul.addr %s324, 8
          %s330 = sadd.s32 %s325, %s329
          %s331 = smul.addr %s330, 64
          %s332 = scalar_lea.hbm %s2, %s331
          %s333 = sshll.u32 %s323, 4
          %s334 = int_to_ptr.vmem [resolvable:$true] %s333
          %339 = dma.hbm_to_vmem [thread:$0]  %s332, 12288, %s334, %s320, 512, 256, 16
        $region28: #{tpu_custom_call.1} parent=15 // pred_fallthru
          _
        // Predicated region
        $region29: #{tpu_custom_call.1} parent=15 // pred_check
          %p340 = pneg %p144
        $region30: #{tpu_custom_call.1} parent=15 // pred_check_branch
          %342 = sbr.rel (%p340) target = $region32
        $region31: #{tpu_custom_call.1} parent=15 // pred_region
          %s343 = sand.u32 %s28, 1
          %s344 = scalar_lea.sflag [#allocation10], %s343
          %s345 = sand.u32 %s134, 1
          %s346 = smul.addr %s345, 768
          %s347 = scalar_lea.vmem [#allocation9], %s346
          %s348 = smul.u32 48, %s36
          %s349 = smul.u32 4, %s35
          %s351 = ssub.s32 12288, 12288
          %352 = vsyncadd %s344, %s351
          %s353 = smul.addr %s348, 8
          %s354 = sadd.s32 %s349, %s353
          %s355 = smul.addr %s354, 64
          %s356 = scalar_lea.hbm %s3, %s355
          %s357 = sshll.u32 %s347, 4
          %s358 = int_to_ptr.vmem [resolvable:$true] %s357
          %363 = dma.hbm_to_vmem [thread:$0]  %s356, 12288, %s358, %s344, 512, 256, 16
        $region32: #{tpu_custom_call.1} parent=15 // pred_fallthru
          _
        // Predicated region
        $region33: #{tpu_custom_call.1} parent=15 // pred_check
          %p364 = pneg %p170
        $region34: #{tpu_custom_call.1} parent=15 // pred_check_branch
          %366 = sbr.rel (%p364) target = $region36
        $region35: #{tpu_custom_call.1} parent=15 // pred_region
          %s367 = sand.u32 %s28, 1
          %s368 = scalar_lea.sflag [#allocation10], %s367
          %s369 = sand.u32 %s160, 1
          %s370 = smul.addr %s369, 4
          %s371 = scalar_lea.vmem [#allocation11], %s370
          %s372 = smul.u32 4, %s35
          %s374 = ssub.s32 64, 64
          %375 = vsyncadd %s368, %s374
          %s376 = smul.addr %s372, 16
          %s377 = scalar_lea.hbm %s4, %s376
          %s379 = sshll.u32 %s371, 4
          %s380 = int_to_ptr.vmem [resolvable:$true] %s379
          %382 = dma.hbm_to_vmem [thread:$0]  %s377, 64, %s380, %s368
        $region36: #{tpu_custom_call.1} parent=15 // pred_fallthru
          _
        // Predicated region
        $region37: #{tpu_custom_call.1} parent=15 // pred_check
          %p383 = pneg %p196
        $region38: #{tpu_custom_call.1} parent=15 // pred_check_branch
          %385 = sbr.rel (%p383) target = $region40
        $region39: #{tpu_custom_call.1} parent=15 // pred_region
          %s386 = sand.u32 %s28, 1
          %s387 = scalar_lea.sflag [#allocation13], %s386
          %s388 = sand.u32 %s186, 1
          %s389 = smul.addr %s388, 4
          %s390 = scalar_lea.vmem [#allocation12], %s389
          %s391 = smul.u32 4, %s35
          %s393 = ssub.s32 64, 64
          %394 = vsyncadd %s387, %s393
          %s395 = smul.addr %s391, 16
          %s396 = scalar_lea.hbm %s5, %s395
          %s398 = sshll.u32 %s390, 4
          %s399 = int_to_ptr.vmem [resolvable:$true] %s398
          %401 = dma.hbm_to_vmem [thread:$0]  %s396, 64, %s399, %s387
        $region40: #{tpu_custom_call.1} parent=15 // pred_fallthru
          _
        // Predicated region
        $region41: #{tpu_custom_call.1} parent=15 // pred_check
          %p402 = pneg %p222
        $region42: #{tpu_custom_call.1} parent=15 // pred_check_branch
          %404 = sbr.rel (%p402) target = $region44
        $region43: #{tpu_custom_call.1} parent=15 // pred_region
          %s405 = sand.u32 %s28, 1
          %s406 = scalar_lea.sflag [#allocation13], %s405
          %s407 = sand.u32 %s212, 1
          %s408 = smul.addr %s407, 4
          %s409 = scalar_lea.vmem [#allocation14], %s408
          %s410 = smul.u32 4, %s35
          %s412 = ssub.s32 64, 64
          %413 = vsyncadd %s406, %s412
          %s414 = smul.addr %s410, 16
          %s415 = scalar_lea.hbm %s6, %s414
          %s417 = sshll.u32 %s409, 4
          %s418 = int_to_ptr.vmem [resolvable:$true] %s417
          %420 = dma.hbm_to_vmem [thread:$0]  %s415, 64, %s418, %s406
        $region44: #{tpu_custom_call.1} parent=15 // pred_fallthru
          _
      $region16: #{tpu_custom_call.1} parent=5 // pred_fallthru
        _
      %p421 = scmp.le.s32.totalorder 1, %s28
      %p422 = scmp.lt.s32.totalorder %s28, 5
      %p423 = pnand %p421, %p422
      %p424 = pneg %p423
      // Predicated region
      $region45: #{tpu_custom_call.1} parent=5 // pred_check
        _
      $region46: #{tpu_custom_call.1} parent=5 // pred_check_branch
        %426 = sbr.rel (%p423) target = $region48
      $region47: #{tpu_custom_call.1} parent=5 // pred_region
        %s427 = ssub.s32 %s28, 1
        %s428 = sand.u32 %s53, 1
        %s429 = scalar_lea.sflag [#allocation4], %s428
        %s430 = sand.u32 %s53, 1
        %s431 = smul.addr %s430, 24
        %s432 = scalar_lea.vmem [#allocation3], %s431
        // Predicated region
        $region49: #{tpu_custom_call.1} parent=47 // pred_check
          %p433 = pneg %p66
        $region50: #{tpu_custom_call.1} parent=47 // pred_check_branch
          %435 = sbr.rel (%p433) target = $region52
        $region51: #{tpu_custom_call.1} parent=47 // pred_region
          %436 = dma.done %s429, 384
        $region52: #{tpu_custom_call.1} parent=47 // pred_fallthru
          _
        %s437 = sand.u32 %s33, 1
        %s438 = scalar_lea.sflag [#allocation7], %s437
        %s439 = sand.u32 %s81, 1
        %s440 = smul.addr %s439, 768
        %s441 = scalar_lea.vmem [#allocation6], %s440
        // Predicated region
        $region53: #{tpu_custom_call.1} parent=47 // pred_check
          %p442 = pneg %p94
        $region54: #{tpu_custom_call.1} parent=47 // pred_check_branch
          %444 = sbr.rel (%p442) target = $region56
        $region55: #{tpu_custom_call.1} parent=47 // pred_region
          %445 = dma.done %s438, 12288
        $region56: #{tpu_custom_call.1} parent=47 // pred_fallthru
          _
        %s446 = sand.u32 %s33, 1
        %s447 = scalar_lea.sflag [#allocation7], %s446
        %s448 = sand.u32 %s109, 1
        %s449 = smul.addr %s448, 768
        %s450 = scalar_lea.vmem [#allocation8], %s449
        // Predicated region
        $region57: #{tpu_custom_call.1} parent=47 // pred_check
          %p451 = pneg %p122
        $region58: #{tpu_custom_call.1} parent=47 // pred_check_branch
          %453 = sbr.rel (%p451) target = $region60
        $region59: #{tpu_custom_call.1} parent=47 // pred_region
          %454 = dma.done %s447, 12288
        $region60: #{tpu_custom_call.1} parent=47 // pred_fallthru
          _
        %s455 = sand.u32 %s33, 1
        %s456 = scalar_lea.sflag [#allocation10], %s455
        %s457 = sand.u32 %s137, 1
        %s458 = smul.addr %s457, 768
        %s459 = scalar_lea.vmem [#allocation9], %s458
        // Predicated region
        $region61: #{tpu_custom_call.1} parent=47 // pred_check
          %p460 = pneg %p150
        $region62: #{tpu_custom_call.1} parent=47 // pred_check_branch
          %462 = sbr.rel (%p460) target = $region64
        $region63: #{tpu_custom_call.1} parent=47 // pred_region
          %463 = dma.done %s456, 12288
        $region64: #{tpu_custom_call.1} parent=47 // pred_fallthru
          _
        %s464 = sand.u32 %s33, 1
        %s465 = scalar_lea.sflag [#allocation10], %s464
        %s466 = sand.u32 %s163, 1
        %s467 = smul.addr %s466, 4
        %s468 = scalar_lea.vmem [#allocation11], %s467
        // Predicated region
        $region65: #{tpu_custom_call.1} parent=47 // pred_check
          %p469 = pneg %p176
        $region66: #{tpu_custom_call.1} parent=47 // pred_check_branch
          %471 = sbr.rel (%p469) target = $region68
        $region67: #{tpu_custom_call.1} parent=47 // pred_region
          %472 = dma.done %s465, 64
        $region68: #{tpu_custom_call.1} parent=47 // pred_fallthru
          _
        %s473 = sand.u32 %s33, 1
        %s474 = scalar_lea.sflag [#allocation13], %s473
        %s475 = sand.u32 %s189, 1
        %s476 = smul.addr %s475, 4
        %s477 = scalar_lea.vmem [#allocation12], %s476
        // Predicated region
        $region69: #{tpu_custom_call.1} parent=47 // pred_check
          %p478 = pneg %p202
        $region70: #{tpu_custom_call.1} parent=47 // pred_check_branch
          %480 = sbr.rel (%p478) target = $region72
        $region71: #{tpu_custom_call.1} parent=47 // pred_region
          %481 = dma.done %s474, 64
        $region72: #{tpu_custom_call.1} parent=47 // pred_fallthru
          _
        %s482 = sand.u32 %s33, 1
        %s483 = scalar_lea.sflag [#allocation13], %s482
        %s484 = sand.u32 %s215, 1
        %s485 = smul.addr %s484, 4
        %s486 = scalar_lea.vmem [#allocation14], %s485
        // Predicated region
        $region73: #{tpu_custom_call.1} parent=47 // pred_check
          %p487 = pneg %p228
        $region74: #{tpu_custom_call.1} parent=47 // pred_check_branch
          %489 = sbr.rel (%p487) target = $region76
        $region75: #{tpu_custom_call.1} parent=47 // pred_region
          %490 = dma.done %s483, 64
        $region76: #{tpu_custom_call.1} parent=47 // pred_fallthru
          _
        %s491 = sand.u32 %s53, 1
        %s492 = scalar_lea.sflag [#allocation4], %s491
        %s493 = sand.u32 %s53, 1
        %s494 = smul.addr %s493, 24
        %s495 = scalar_lea.vmem [#allocation3], %s494
        %p496 = pneg %p66
        %p497 = pneg %p63
        %s498 = sand.u32 %s33, 1
        %s499 = scalar_lea.sflag [#allocation7], %s498
        %s500 = sand.u32 %s81, 1
        %s501 = smul.addr %s500, 768
        %s502 = scalar_lea.vmem [#allocation6], %s501
        %p503 = pneg %p94
        %p504 = pneg %p91
        %s505 = sand.u32 %s33, 1
        %s506 = scalar_lea.sflag [#allocation7], %s505
        %s507 = sand.u32 %s109, 1
        %s508 = smul.addr %s507, 768
        %s509 = scalar_lea.vmem [#allocation8], %s508
        %p510 = pneg %p122
        %p511 = pneg %p119
        %s512 = sand.u32 %s33, 1
        %s513 = scalar_lea.sflag [#allocation10], %s512
        %s514 = sand.u32 %s137, 1
        %s515 = smul.addr %s514, 768
        %s516 = scalar_lea.vmem [#allocation9], %s515
        %p517 = pneg %p150
        %p518 = pneg %p147
        %s519 = sand.u32 %s33, 1
        %s520 = scalar_lea.sflag [#allocation10], %s519
        %s521 = sand.u32 %s163, 1
        %s522 = smul.addr %s521, 4
        %s523 = scalar_lea.vmem [#allocation11], %s522
        %p524 = pneg %p176
        %p525 = pneg %p173
        %s526 = sand.u32 %s33, 1
        %s527 = scalar_lea.sflag [#allocation13], %s526
        %s528 = sand.u32 %s189, 1
        %s529 = smul.addr %s528, 4
        %s530 = scalar_lea.vmem [#allocation12], %s529
        %p531 = pneg %p202
        %p532 = pneg %p199
        %s533 = sand.u32 %s33, 1
        %s534 = scalar_lea.sflag [#allocation13], %s533
        %s535 = sand.u32 %s215, 1
        %s536 = smul.addr %s535, 4
        %s537 = scalar_lea.vmem [#allocation14], %s536
        %p538 = pneg %p228
        %p539 = pneg %p225
        %p540 = pneg %p254
        %p541 = pneg %p251
        %s542 = sand.u32 %s241, 1
        %s543 = scalar_lea.sflag [#allocation5], %s542
        %s544 = sand.u32 %s241, 1
        %s545 = smul.addr %s544, 32
        %s546 = scalar_lea.vmem [#allocation15], %s545
        %s547 = smul.u32 3, %s38
        %s548 = smul.u32 48, %s38
        %s549 = smul.u32 4, %s37
        %s550 = smul.u32 48, %s38
        %s551 = smul.u32 4, %s37
        %s552 = smul.u32 48, %s38
        %s553 = smul.u32 4, %s37
        %s554 = smul.u32 4, %s37
        %s555 = smul.u32 4, %s37
        %s556 = smul.u32 4, %s37
        %s557 = smul.u32 4, %s37
        %p559 = scmp.eq.s32.totalorder %s38, 0
        // Predicated region
        $region77: #{tpu_custom_call.1} parent=47 // pred_check
          %p560 = pneg %p559
        $region78: #{tpu_custom_call.1} parent=47 // pred_check_branch
          %562 = sbr.rel (%p560) target = $region80
        $region79: #{tpu_custom_call.1} parent=47 // pred_region
          %563 = vst [vmem:[#allocation2] sm:$0xff] 0.0
          %564 = vst [vmem:[#allocation2 + $0x8] sm:$0xff] 0.0
          %565 = vst [vmem:[#allocation2 + $0x10] sm:$0xff] 0.0
          %566 = vst [vmem:[#allocation2 + $0x18] sm:$0xff] 0.0
        $region80: #{tpu_custom_call.1} parent=47 // pred_fallthru
          _
        %v567 = vld [vmem:[%s441] sm:$0xff]
        %v568 = vld [vmem:[%s441 + $0x8] sm:$0xff]
        %v569 = vld [vmem:[%s441 + $0x10] sm:$0xff]
        %v570 = vld [vmem:[%s441 + $0x18] sm:$0xff]
        %v571 = vld [vmem:[%s441 + $0x20] sm:$0xff]
        %v572 = vld [vmem:[%s441 + $0x28] sm:$0xff]
        %v573 = vld [vmem:[%s441 + $0x30] sm:$0xff]
        %v574 = vld [vmem:[%s441 + $0x38] sm:$0xff]
        %v575 = vld [vmem:[%s441 + $0x40] sm:$0xff]
        %v576 = vld [vmem:[%s441 + $0x48] sm:$0xff]
        %v577 = vld [vmem:[%s441 + $0x50] sm:$0xff]
        %v578 = vld [vmem:[%s441 + $0x58] sm:$0xff]
        %v579 = vld [vmem:[%s441 + $0x60] sm:$0xff]
        %v580 = vld [vmem:[%s441 + $0x68] sm:$0xff]
        %v581 = vld [vmem:[%s441 + $0x70] sm:$0xff]
        %v582 = vld [vmem:[%s441 + $0x78] sm:$0xff]
        %v583 = vld [vmem:[%s441 + $0x80] sm:$0xff]
        %v584 = vld [vmem:[%s441 + $0x88] sm:$0xff]
        %v585 = vld [vmem:[%s441 + $0x90] sm:$0xff]
        %v586 = vld [vmem:[%s441 + $0x98] sm:$0xff]
        %v587 = vld [vmem:[%s441 + $0xa0] sm:$0xff]
        %v588 = vld [vmem:[%s441 + $0xa8] sm:$0xff]
        %v589 = vld [vmem:[%s441 + $0xb0] sm:$0xff]
        %v590 = vld [vmem:[%s441 + $0xb8] sm:$0xff]
        %v591 = vld [vmem:[%s441 + $0xc0] sm:$0xff]
        %v592 = vld [vmem:[%s441 + $0xc8] sm:$0xff]
        %v593 = vld [vmem:[%s441 + $0xd0] sm:$0xff]
        %v594 = vld [vmem:[%s441 + $0xd8] sm:$0xff]
        %v595 = vld [vmem:[%s441 + $0xe0] sm:$0xff]
        %v596 = vld [vmem:[%s441 + $0xe8] sm:$0xff]
        %v597 = vld [vmem:[%s441 + $0xf0] sm:$0xff]
        %v598 = vld [vmem:[%s441 + $0xf8] sm:$0xff]
        %v599 = vld [vmem:[%s441 + $0x100] sm:$0xff]
        %v600 = vld [vmem:[%s441 + $0x108] sm:$0xff]
        %v601 = vld [vmem:[%s441 + $0x110] sm:$0xff]
        %v602 = vld [vmem:[%s441 + $0x118] sm:$0xff]
        %v603 = vld [vmem:[%s441 + $0x120] sm:$0xff]
        %v604 = vld [vmem:[%s441 + $0x128] sm:$0xff]
        %v605 = vld [vmem:[%s441 + $0x130] sm:$0xff]
        %v606 = vld [vmem:[%s441 + $0x138] sm:$0xff]
        %v607 = vld [vmem:[%s441 + $0x140] sm:$0xff]
        %v608 = vld [vmem:[%s441 + $0x148] sm:$0xff]
        %v609 = vld [vmem:[%s441 + $0x150] sm:$0xff]
        %v610 = vld [vmem:[%s441 + $0x158] sm:$0xff]
        %v611 = vld [vmem:[%s441 + $0x160] sm:$0xff]
        %v612 = vld [vmem:[%s441 + $0x168] sm:$0xff]
        %v613 = vld [vmem:[%s441 + $0x170] sm:$0xff]
        %v614 = vld [vmem:[%s441 + $0x178] sm:$0xff]
        %v615 = vld [vmem:[%s441 + $0x180] sm:$0xff]
        %v616 = vld [vmem:[%s441 + $0x188] sm:$0xff]
        %v617 = vld [vmem:[%s441 + $0x190] sm:$0xff]
        %v618 = vld [vmem:[%s441 + $0x198] sm:$0xff]
        %v619 = vld [vmem:[%s441 + $0x1a0] sm:$0xff]
        %v620 = vld [vmem:[%s441 + $0x1a8] sm:$0xff]
        %v621 = vld [vmem:[%s441 + $0x1b0] sm:$0xff]
        %v622 = vld [vmem:[%s441 + $0x1b8] sm:$0xff]
        %v623 = vld [vmem:[%s441 + $0x1c0] sm:$0xff]
        %v624 = vld [vmem:[%s441 + $0x1c8] sm:$0xff]
        %v625 = vld [vmem:[%s441 + $0x1d0] sm:$0xff]
        %v626 = vld [vmem:[%s441 + $0x1d8] sm:$0xff]
        %v627 = vld [vmem:[%s441 + $0x1e0] sm:$0xff]
        %v628 = vld [vmem:[%s441 + $0x1e8] sm:$0xff]
        %v629 = vld [vmem:[%s441 + $0x1f0] sm:$0xff]
        %v630 = vld [vmem:[%s441 + $0x1f8] sm:$0xff]
        %v631 = vld [vmem:[%s441 + $0x200] sm:$0xff]
        %v632 = vld [vmem:[%s441 + $0x208] sm:$0xff]
        %v633 = vld [vmem:[%s441 + $0x210] sm:$0xff]
        %v634 = vld [vmem:[%s441 + $0x218] sm:$0xff]
        %v635 = vld [vmem:[%s441 + $0x220] sm:$0xff]
        %v636 = vld [vmem:[%s441 + $0x228] sm:$0xff]
        %v637 = vld [vmem:[%s441 + $0x230] sm:$0xff]
        %v638 = vld [vmem:[%s441 + $0x238] sm:$0xff]
        %v639 = vld [vmem:[%s441 + $0x240] sm:$0xff]
        %v640 = vld [vmem:[%s441 + $0x248] sm:$0xff]
        %v641 = vld [vmem:[%s441 + $0x250] sm:$0xff]
        %v642 = vld [vmem:[%s441 + $0x258] sm:$0xff]
        %v643 = vld [vmem:[%s441 + $0x260] sm:$0xff]
        %v644 = vld [vmem:[%s441 + $0x268] sm:$0xff]
        %v645 = vld [vmem:[%s441 + $0x270] sm:$0xff]
        %v646 = vld [vmem:[%s441 + $0x278] sm:$0xff]
        %v647 = vld [vmem:[%s441 + $0x280] sm:$0xff]
        %v648 = vld [vmem:[%s441 + $0x288] sm:$0xff]
        %v649 = vld [vmem:[%s441 + $0x290] sm:$0xff]
        %v650 = vld [vmem:[%s441 + $0x298] sm:$0xff]
        %v651 = vld [vmem:[%s441 + $0x2a0] sm:$0xff]
        %v652 = vld [vmem:[%s441 + $0x2a8] sm:$0xff]
        %v653 = vld [vmem:[%s441 + $0x2b0] sm:$0xff]
        %v654 = vld [vmem:[%s441 + $0x2b8] sm:$0xff]
        %v655 = vld [vmem:[%s441 + $0x2c0] sm:$0xff]
        %v656 = vld [vmem:[%s441 + $0x2c8] sm:$0xff]
        %v657 = vld [vmem:[%s441 + $0x2d0] sm:$0xff]
        %v658 = vld [vmem:[%s441 + $0x2d8] sm:$0xff]
        %v659 = vld [vmem:[%s441 + $0x2e0] sm:$0xff]
        %v660 = vld [vmem:[%s441 + $0x2e8] sm:$0xff]
        %v661 = vld [vmem:[%s441 + $0x2f0] sm:$0xff]
        %v662 = vld [vmem:[%s441 + $0x2f8] sm:$0xff]
        %v663 = vunpack.c.l.bf16 %v567
        %v664 = vunpack.c.h.bf16 %v567
        %v665 = vunpack.c.l.bf16 %v568
        %v666 = vunpack.c.h.bf16 %v568
        %v667 = vunpack.c.l.bf16 %v569
        %v668 = vunpack.c.h.bf16 %v569
        %v669 = vunpack.c.l.bf16 %v570
        %v670 = vunpack.c.h.bf16 %v570
        %v671 = vunpack.c.l.bf16 %v571
        %v672 = vunpack.c.h.bf16 %v571
        %v673 = vunpack.c.l.bf16 %v572
        %v674 = vunpack.c.h.bf16 %v572
        %v675 = vunpack.c.l.bf16 %v573
        %v676 = vunpack.c.h.bf16 %v573
        %v677 = vunpack.c.l.bf16 %v574
        %v678 = vunpack.c.h.bf16 %v574
        %v679 = vunpack.c.l.bf16 %v575
        %v680 = vunpack.c.h.bf16 %v575
        %v681 = vunpack.c.l.bf16 %v576
        %v682 = vunpack.c.h.bf16 %v576
        %v683 = vunpack.c.l.bf16 %v577
        %v684 = vunpack.c.h.bf16 %v577
        %v685 = vunpack.c.l.bf16 %v578
        %v686 = vunpack.c.h.bf16 %v578
        %v687 = vunpack.c.l.bf16 %v579
        %v688 = vunpack.c.h.bf16 %v579
        %v689 = vunpack.c.l.bf16 %v580
        %v690 = vunpack.c.h.bf16 %v580
        %v691 = vunpack.c.l.bf16 %v581
        %v692 = vunpack.c.h.bf16 %v581
        %v693 = vunpack.c.l.bf16 %v582
        %v694 = vunpack.c.h.bf16 %v582
        %v695 = vunpack.c.l.bf16 %v583
        %v696 = vunpack.c.h.bf16 %v583
        %v697 = vunpack.c.l.bf16 %v584
        %v698 = vunpack.c.h.bf16 %v584
        %v699 = vunpack.c.l.bf16 %v585
        %v700 = vunpack.c.h.bf16 %v585
        %v701 = vunpack.c.l.bf16 %v586
        %v702 = vunpack.c.h.bf16 %v586
        %v703 = vunpack.c.l.bf16 %v587
        %v704 = vunpack.c.h.bf16 %v587
        %v705 = vunpack.c.l.bf16 %v588
        %v706 = vunpack.c.h.bf16 %v588
        %v707 = vunpack.c.l.bf16 %v589
        %v708 = vunpack.c.h.bf16 %v589
        %v709 = vunpack.c.l.bf16 %v590
        %v710 = vunpack.c.h.bf16 %v590
        %v711 = vunpack.c.l.bf16 %v591
        %v712 = vunpack.c.h.bf16 %v591
        %v713 = vunpack.c.l.bf16 %v592
        %v714 = vunpack.c.h.bf16 %v592
        %v715 = vunpack.c.l.bf16 %v593
        %v716 = vunpack.c.h.bf16 %v593
        %v717 = vunpack.c.l.bf16 %v594
        %v718 = vunpack.c.h.bf16 %v594
        %v719 = vunpack.c.l.bf16 %v595
        %v720 = vunpack.c.h.bf16 %v595
        %v721 = vunpack.c.l.bf16 %v596
        %v722 = vunpack.c.h.bf16 %v596
        %v723 = vunpack.c.l.bf16 %v597
        %v724 = vunpack.c.h.bf16 %v597
        %v725 = vunpack.c.l.bf16 %v598
        %v726 = vunpack.c.h.bf16 %v598
        %v727 = vunpack.c.l.bf16 %v599
        %v728 = vunpack.c.h.bf16 %v599
        %v729 = vunpack.c.l.bf16 %v600
        %v730 = vunpack.c.h.bf16 %v600
        %v731 = vunpack.c.l.bf16 %v601
        %v732 = vunpack.c.h.bf16 %v601
        %v733 = vunpack.c.l.bf16 %v602
        %v734 = vunpack.c.h.bf16 %v602
        %v735 = vunpack.c.l.bf16 %v603
        %v736 = vunpack.c.h.bf16 %v603
        %v737 = vunpack.c.l.bf16 %v604
        %v738 = vunpack.c.h.bf16 %v604
        %v739 = vunpack.c.l.bf16 %v605
        %v740 = vunpack.c.h.bf16 %v605
        %v741 = vunpack.c.l.bf16 %v606
        %v742 = vunpack.c.h.bf16 %v606
        %v743 = vunpack.c.l.bf16 %v607
        %v744 = vunpack.c.h.bf16 %v607
        %v745 = vunpack.c.l.bf16 %v608
        %v746 = vunpack.c.h.bf16 %v608
        %v747 = vunpack.c.l.bf16 %v609
        %v748 = vunpack.c.h.bf16 %v609
        %v749 = vunpack.c.l.bf16 %v610
        %v750 = vunpack.c.h.bf16 %v610
        %v751 = vunpack.c.l.bf16 %v611
        %v752 = vunpack.c.h.bf16 %v611
        %v753 = vunpack.c.l.bf16 %v612
        %v754 = vunpack.c.h.bf16 %v612
        %v755 = vunpack.c.l.bf16 %v613
        %v756 = vunpack.c.h.bf16 %v613
        %v757 = vunpack.c.l.bf16 %v614
        %v758 = vunpack.c.h.bf16 %v614
        %v759 = vunpack.c.l.bf16 %v615
        %v760 = vunpack.c.h.bf16 %v615
        %v761 = vunpack.c.l.bf16 %v616
        %v762 = vunpack.c.h.bf16 %v616
        %v763 = vunpack.c.l.bf16 %v617
        %v764 = vunpack.c.h.bf16 %v617
        %v765 = vunpack.c.l.bf16 %v618
        %v766 = vunpack.c.h.bf16 %v618
        %v767 = vunpack.c.l.bf16 %v619
        %v768 = vunpack.c.h.bf16 %v619
        %v769 = vunpack.c.l.bf16 %v620
        %v770 = vunpack.c.h.bf16 %v620
        %v771 = vunpack.c.l.bf16 %v621
        %v772 = vunpack.c.h.bf16 %v621
        %v773 = vunpack.c.l.bf16 %v622
        %v774 = vunpack.c.h.bf16 %v622
        %v775 = vunpack.c.l.bf16 %v623
        %v776 = vunpack.c.h.bf16 %v623
        %v777 = vunpack.c.l.bf16 %v624
        %v778 = vunpack.c.h.bf16 %v624
        %v779 = vunpack.c.l.bf16 %v625
        %v780 = vunpack.c.h.bf16 %v625
        %v781 = vunpack.c.l.bf16 %v626
        %v782 = vunpack.c.h.bf16 %v626
        %v783 = vunpack.c.l.bf16 %v627
        %v784 = vunpack.c.h.bf16 %v627
        %v785 = vunpack.c.l.bf16 %v628
        %v786 = vunpack.c.h.bf16 %v628
        %v787 = vunpack.c.l.bf16 %v629
        %v788 = vunpack.c.h.bf16 %v629
        %v789 = vunpack.c.l.bf16 %v630
        %v790 = vunpack.c.h.bf16 %v630
        %v791 = vunpack.c.l.bf16 %v631
        %v792 = vunpack.c.h.bf16 %v631
        %v793 = vunpack.c.l.bf16 %v632
        %v794 = vunpack.c.h.bf16 %v632
        %v795 = vunpack.c.l.bf16 %v633
        %v796 = vunpack.c.h.bf16 %v633
        %v797 = vunpack.c.l.bf16 %v634
        %v798 = vunpack.c.h.bf16 %v634
        %v799 = vunpack.c.l.bf16 %v635
        %v800 = vunpack.c.h.bf16 %v635
        %v801 = vunpack.c.l.bf16 %v636
        %v802 = vunpack.c.h.bf16 %v636
        %v803 = vunpack.c.l.bf16 %v637
        %v804 = vunpack.c.h.bf16 %v637
        %v805 = vunpack.c.l.bf16 %v638
        %v806 = vunpack.c.h.bf16 %v638
        %v807 = vunpack.c.l.bf16 %v639
        %v808 = vunpack.c.h.bf16 %v639
        %v809 = vunpack.c.l.bf16 %v640
        %v810 = vunpack.c.h.bf16 %v640
        %v811 = vunpack.c.l.bf16 %v641
        %v812 = vunpack.c.h.bf16 %v641
        %v813 = vunpack.c.l.bf16 %v642
        %v814 = vunpack.c.h.bf16 %v642
        %v815 = vunpack.c.l.bf16 %v643
        %v816 = vunpack.c.h.bf16 %v643
        %v817 = vunpack.c.l.bf16 %v644
        %v818 = vunpack.c.h.bf16 %v644
        %v819 = vunpack.c.l.bf16 %v645
        %v820 = vunpack.c.h.bf16 %v645
        %v821 = vunpack.c.l.bf16 %v646
        %v822 = vunpack.c.h.bf16 %v646
        %v823 = vunpack.c.l.bf16 %v647
        %v824 = vunpack.c.h.bf16 %v647
        %v825 = vunpack.c.l.bf16 %v648
        %v826 = vunpack.c.h.bf16 %v648
        %v827 = vunpack.c.l.bf16 %v649
        %v828 = vunpack.c.h.bf16 %v649
        %v829 = vunpack.c.l.bf16 %v650
        %v830 = vunpack.c.h.bf16 %v650
        %v831 = vunpack.c.l.bf16 %v651
        %v832 = vunpack.c.h.bf16 %v651
        %v833 = vunpack.c.l.bf16 %v652
        %v834 = vunpack.c.h.bf16 %v652
        %v835 = vunpack.c.l.bf16 %v653
        %v836 = vunpack.c.h.bf16 %v653
        %v837 = vunpack.c.l.bf16 %v654
        %v838 = vunpack.c.h.bf16 %v654
        %v839 = vunpack.c.l.bf16 %v655
        %v840 = vunpack.c.h.bf16 %v655
        %v841 = vunpack.c.l.bf16 %v656
        %v842 = vunpack.c.h.bf16 %v656
        %v843 = vunpack.c.l.bf16 %v657
        %v844 = vunpack.c.h.bf16 %v657
        %v845 = vunpack.c.l.bf16 %v658
        %v846 = vunpack.c.h.bf16 %v658
        %v847 = vunpack.c.l.bf16 %v659
        %v848 = vunpack.c.h.bf16 %v659
        %v849 = vunpack.c.l.bf16 %v660
        %v850 = vunpack.c.h.bf16 %v660
        %v851 = vunpack.c.l.bf16 %v661
        %v852 = vunpack.c.h.bf16 %v661
        %v853 = vunpack.c.l.bf16 %v662
        %v854 = vunpack.c.h.bf16 %v662
        %v855 = vld [vmem:[%s450] sm:$0xff]
        %v856 = vld [vmem:[%s450 + $0x8] sm:$0xff]
        %v857 = vld [vmem:[%s450 + $0x10] sm:$0xff]
        %v858 = vld [vmem:[%s450 + $0x18] sm:$0xff]
        %v859 = vld [vmem:[%s450 + $0x20] sm:$0xff]
        %v860 = vld [vmem:[%s450 + $0x28] sm:$0xff]
        %v861 = vld [vmem:[%s450 + $0x30] sm:$0xff]
        %v862 = vld [vmem:[%s450 + $0x38] sm:$0xff]
        %v863 = vld [vmem:[%s450 + $0x40] sm:$0xff]
        %v864 = vld [vmem:[%s450 + $0x48] sm:$0xff]
        %v865 = vld [vmem:[%s450 + $0x50] sm:$0xff]
        %v866 = vld [vmem:[%s450 + $0x58] sm:$0xff]
        %v867 = vld [vmem:[%s450 + $0x60] sm:$0xff]
        %v868 = vld [vmem:[%s450 + $0x68] sm:$0xff]
        %v869 = vld [vmem:[%s450 + $0x70] sm:$0xff]
        %v870 = vld [vmem:[%s450 + $0x78] sm:$0xff]
        %v871 = vld [vmem:[%s450 + $0x80] sm:$0xff]
        %v872 = vld [vmem:[%s450 + $0x88] sm:$0xff]
        %v873 = vld [vmem:[%s450 + $0x90] sm:$0xff]
        %v874 = vld [vmem:[%s450 + $0x98] sm:$0xff]
        %v875 = vld [vmem:[%s450 + $0xa0] sm:$0xff]
        %v876 = vld [vmem:[%s450 + $0xa8] sm:$0xff]
        %v877 = vld [vmem:[%s450 + $0xb0] sm:$0xff]
        %v878 = vld [vmem:[%s450 + $0xb8] sm:$0xff]
        %v879 = vld [vmem:[%s450 + $0xc0] sm:$0xff]
        %v880 = vld [vmem:[%s450 + $0xc8] sm:$0xff]
        %v881 = vld [vmem:[%s450 + $0xd0] sm:$0xff]
        %v882 = vld [vmem:[%s450 + $0xd8] sm:$0xff]
        %v883 = vld [vmem:[%s450 + $0xe0] sm:$0xff]
        %v884 = vld [vmem:[%s450 + $0xe8] sm:$0xff]
        %v885 = vld [vmem:[%s450 + $0xf0] sm:$0xff]
        %v886 = vld [vmem:[%s450 + $0xf8] sm:$0xff]
        %v887 = vld [vmem:[%s450 + $0x100] sm:$0xff]
        %v888 = vld [vmem:[%s450 + $0x108] sm:$0xff]
        %v889 = vld [vmem:[%s450 + $0x110] sm:$0xff]
        %v890 = vld [vmem:[%s450 + $0x118] sm:$0xff]
        %v891 = vld [vmem:[%s450 + $0x120] sm:$0xff]
        %v892 = vld [vmem:[%s450 + $0x128] sm:$0xff]
        %v893 = vld [vmem:[%s450 + $0x130] sm:$0xff]
        %v894 = vld [vmem:[%s450 + $0x138] sm:$0xff]
        %v895 = vld [vmem:[%s450 + $0x140] sm:$0xff]
        %v896 = vld [vmem:[%s450 + $0x148] sm:$0xff]
        %v897 = vld [vmem:[%s450 + $0x150] sm:$0xff]
        %v898 = vld [vmem:[%s450 + $0x158] sm:$0xff]
        %v899 = vld [vmem:[%s450 + $0x160] sm:$0xff]
        %v900 = vld [vmem:[%s450 + $0x168] sm:$0xff]
        %v901 = vld [vmem:[%s450 + $0x170] sm:$0xff]
        %v902 = vld [vmem:[%s450 + $0x178] sm:$0xff]
        %v903 = vld [vmem:[%s450 + $0x180] sm:$0xff]
        %v904 = vld [vmem:[%s450 + $0x188] sm:$0xff]
        %v905 = vld [vmem:[%s450 + $0x190] sm:$0xff]
        %v906 = vld [vmem:[%s450 + $0x198] sm:$0xff]
        %v907 = vld [vmem:[%s450 + $0x1a0] sm:$0xff]
        %v908 = vld [vmem:[%s450 + $0x1a8] sm:$0xff]
        %v909 = vld [vmem:[%s450 + $0x1b0] sm:$0xff]
        %v910 = vld [vmem:[%s450 + $0x1b8] sm:$0xff]
        %v911 = vld [vmem:[%s450 + $0x1c0] sm:$0xff]
        %v912 = vld [vmem:[%s450 + $0x1c8] sm:$0xff]
        %v913 = vld [vmem:[%s450 + $0x1d0] sm:$0xff]
        %v914 = vld [vmem:[%s450 + $0x1d8] sm:$0xff]
        %v915 = vld [vmem:[%s450 + $0x1e0] sm:$0xff]
        %v916 = vld [vmem:[%s450 + $0x1e8] sm:$0xff]
        %v917 = vld [vmem:[%s450 + $0x1f0] sm:$0xff]
        %v918 = vld [vmem:[%s450 + $0x1f8] sm:$0xff]
        %v919 = vld [vmem:[%s450 + $0x200] sm:$0xff]
        %v920 = vld [vmem:[%s450 + $0x208] sm:$0xff]
        %v921 = vld [vmem:[%s450 + $0x210] sm:$0xff]
        %v922 = vld [vmem:[%s450 + $0x218] sm:$0xff]
        %v923 = vld [vmem:[%s450 + $0x220] sm:$0xff]
        %v924 = vld [vmem:[%s450 + $0x228] sm:$0xff]
        %v925 = vld [vmem:[%s450 + $0x230] sm:$0xff]
        %v926 = vld [vmem:[%s450 + $0x238] sm:$0xff]
        %v927 = vld [vmem:[%s450 + $0x240] sm:$0xff]
        %v928 = vld [vmem:[%s450 + $0x248] sm:$0xff]
        %v929 = vld [vmem:[%s450 + $0x250] sm:$0xff]
        %v930 = vld [vmem:[%s450 + $0x258] sm:$0xff]
        %v931 = vld [vmem:[%s450 + $0x260] sm:$0xff]
        %v932 = vld [vmem:[%s450 + $0x268] sm:$0xff]
        %v933 = vld [vmem:[%s450 + $0x270] sm:$0xff]
        %v934 = vld [vmem:[%s450 + $0x278] sm:$0xff]
        %v935 = vld [vmem:[%s450 + $0x280] sm:$0xff]
        %v936 = vld [vmem:[%s450 + $0x288] sm:$0xff]
        %v937 = vld [vmem:[%s450 + $0x290] sm:$0xff]
        %v938 = vld [vmem:[%s450 + $0x298] sm:$0xff]
        %v939 = vld [vmem:[%s450 + $0x2a0] sm:$0xff]
        %v940 = vld [vmem:[%s450 + $0x2a8] sm:$0xff]
        %v941 = vld [vmem:[%s450 + $0x2b0] sm:$0xff]
        %v942 = vld [vmem:[%s450 + $0x2b8] sm:$0xff]
        %v943 = vld [vmem:[%s450 + $0x2c0] sm:$0xff]
        %v944 = vld [vmem:[%s450 + $0x2c8] sm:$0xff]
        %v945 = vld [vmem:[%s450 + $0x2d0] sm:$0xff]
        %v946 = vld [vmem:[%s450 + $0x2d8] sm:$0xff]
        %v947 = vld [vmem:[%s450 + $0x2e0] sm:$0xff]
        %v948 = vld [vmem:[%s450 + $0x2e8] sm:$0xff]
        %v949 = vld [vmem:[%s450 + $0x2f0] sm:$0xff]
        %v950 = vld [vmem:[%s450 + $0x2f8] sm:$0xff]
        %v951 = vunpack.c.l.bf16 %v855
        %v952 = vunpack.c.h.bf16 %v855
        %v953 = vunpack.c.l.bf16 %v856
        %v954 = vunpack.c.h.bf16 %v856
        %v955 = vunpack.c.l.bf16 %v857
        %v956 = vunpack.c.h.bf16 %v857
        %v957 = vunpack.c.l.bf16 %v858
        %v958 = vunpack.c.h.bf16 %v858
        %v959 = vunpack.c.l.bf16 %v859
        %v960 = vunpack.c.h.bf16 %v859
        %v961 = vunpack.c.l.bf16 %v860
        %v962 = vunpack.c.h.bf16 %v860
        %v963 = vunpack.c.l.bf16 %v861
        %v964 = vunpack.c.h.bf16 %v861
        %v965 = vunpack.c.l.bf16 %v862
        %v966 = vunpack.c.h.bf16 %v862
        %v967 = vunpack.c.l.bf16 %v863
        %v968 = vunpack.c.h.bf16 %v863
        %v969 = vunpack.c.l.bf16 %v864
        %v970 = vunpack.c.h.bf16 %v864
        %v971 = vunpack.c.l.bf16 %v865
        %v972 = vunpack.c.h.bf16 %v865
        %v973 = vunpack.c.l.bf16 %v866
        %v974 = vunpack.c.h.bf16 %v866
        %v975 = vunpack.c.l.bf16 %v867
        %v976 = vunpack.c.h.bf16 %v867
        %v977 = vunpack.c.l.bf16 %v868
        %v978 = vunpack.c.h.bf16 %v868
        %v979 = vunpack.c.l.bf16 %v869
        %v980 = vunpack.c.h.bf16 %v869
        %v981 = vunpack.c.l.bf16 %v870
        %v982 = vunpack.c.h.bf16 %v870
        %v983 = vunpack.c.l.bf16 %v871
        %v984 = vunpack.c.h.bf16 %v871
        %v985 = vunpack.c.l.bf16 %v872
        %v986 = vunpack.c.h.bf16 %v872
        %v987 = vunpack.c.l.bf16 %v873
        %v988 = vunpack.c.h.bf16 %v873
        %v989 = vunpack.c.l.bf16 %v874
        %v990 = vunpack.c.h.bf16 %v874
        %v991 = vunpack.c.l.bf16 %v875
        %v992 = vunpack.c.h.bf16 %v875
        %v993 = vunpack.c.l.bf16 %v876
        %v994 = vunpack.c.h.bf16 %v876
        %v995 = vunpack.c.l.bf16 %v877
        %v996 = vunpack.c.h.bf16 %v877
        %v997 = vunpack.c.l.bf16 %v878
        %v998 = vunpack.c.h.bf16 %v878
        %v999 = vunpack.c.l.bf16 %v879
        %v1000 = vunpack.c.h.bf16 %v879
        %v1001 = vunpack.c.l.bf16 %v880
        %v1002 = vunpack.c.h.bf16 %v880
        %v1003 = vunpack.c.l.bf16 %v881
        %v1004 = vunpack.c.h.bf16 %v881
        %v1005 = vunpack.c.l.bf16 %v882
        %v1006 = vunpack.c.h.bf16 %v882
        %v1007 = vunpack.c.l.bf16 %v883
        %v1008 = vunpack.c.h.bf16 %v883
        %v1009 = vunpack.c.l.bf16 %v884
        %v1010 = vunpack.c.h.bf16 %v884
        %v1011 = vunpack.c.l.bf16 %v885
        %v1012 = vunpack.c.h.bf16 %v885
        %v1013 = vunpack.c.l.bf16 %v886
        %v1014 = vunpack.c.h.bf16 %v886
        %v1015 = vunpack.c.l.bf16 %v887
        %v1016 = vunpack.c.h.bf16 %v887
        %v1017 = vunpack.c.l.bf16 %v888
        %v1018 = vunpack.c.h.bf16 %v888
        %v1019 = vunpack.c.l.bf16 %v889
        %v1020 = vunpack.c.h.bf16 %v889
        %v1021 = vunpack.c.l.bf16 %v890
        %v1022 = vunpack.c.h.bf16 %v890
        %v1023 = vunpack.c.l.bf16 %v891
        %v1024 = vunpack.c.h.bf16 %v891
        %v1025 = vunpack.c.l.bf16 %v892
        %v1026 = vunpack.c.h.bf16 %v892
        %v1027 = vunpack.c.l.bf16 %v893
        %v1028 = vunpack.c.h.bf16 %v893
        %v1029 = vunpack.c.l.bf16 %v894
        %v1030 = vunpack.c.h.bf16 %v894
        %v1031 = vunpack.c.l.bf16 %v895
        %v1032 = vunpack.c.h.bf16 %v895
        %v1033 = vunpack.c.l.bf16 %v896
        %v1034 = vunpack.c.h.bf16 %v896
        %v1035 = vunpack.c.l.bf16 %v897
        %v1036 = vunpack.c.h.bf16 %v897
        %v1037 = vunpack.c.l.bf16 %v898
        %v1038 = vunpack.c.h.bf16 %v898
        %v1039 = vunpack.c.l.bf16 %v899
        %v1040 = vunpack.c.h.bf16 %v899
        %v1041 = vunpack.c.l.bf16 %v900
        %v1042 = vunpack.c.h.bf16 %v900
        %v1043 = vunpack.c.l.bf16 %v901
        %v1044 = vunpack.c.h.bf16 %v901
        %v1045 = vunpack.c.l.bf16 %v902
        %v1046 = vunpack.c.h.bf16 %v902
        %v1047 = vunpack.c.l.bf16 %v903
        %v1048 = vunpack.c.h.bf16 %v903
        %v1049 = vunpack.c.l.bf16 %v904
        %v1050 = vunpack.c.h.bf16 %v904
        %v1051 = vunpack.c.l.bf16 %v905
        %v1052 = vunpack.c.h.bf16 %v905
        %v1053 = vunpack.c.l.bf16 %v906
        %v1054 = vunpack.c.h.bf16 %v906
        %v1055 = vunpack.c.l.bf16 %v907
        %v1056 = vunpack.c.h.bf16 %v907
        %v1057 = vunpack.c.l.bf16 %v908
        %v1058 = vunpack.c.h.bf16 %v908
        %v1059 = vunpack.c.l.bf16 %v909
        %v1060 = vunpack.c.h.bf16 %v909
        %v1061 = vunpack.c.l.bf16 %v910
        %v1062 = vunpack.c.h.bf16 %v910
        %v1063 = vunpack.c.l.bf16 %v911
        %v1064 = vunpack.c.h.bf16 %v911
        %v1065 = vunpack.c.l.bf16 %v912
        %v1066 = vunpack.c.h.bf16 %v912
        %v1067 = vunpack.c.l.bf16 %v913
        %v1068 = vunpack.c.h.bf16 %v913
        %v1069 = vunpack.c.l.bf16 %v914
        %v1070 = vunpack.c.h.bf16 %v914
        %v1071 = vunpack.c.l.bf16 %v915
        %v1072 = vunpack.c.h.bf16 %v915
        %v1073 = vunpack.c.l.bf16 %v916
        %v1074 = vunpack.c.h.bf16 %v916
        %v1075 = vunpack.c.l.bf16 %v917
        %v1076 = vunpack.c.h.bf16 %v917
        %v1077 = vunpack.c.l.bf16 %v918
        %v1078 = vunpack.c.h.bf16 %v918
        %v1079 = vunpack.c.l.bf16 %v919
        %v1080 = vunpack.c.h.bf16 %v919
        %v1081 = vunpack.c.l.bf16 %v920
        %v1082 = vunpack.c.h.bf16 %v920
        %v1083 = vunpack.c.l.bf16 %v921
        %v1084 = vunpack.c.h.bf16 %v921
        %v1085 = vunpack.c.l.bf16 %v922
        %v1086 = vunpack.c.h.bf16 %v922
        %v1087 = vunpack.c.l.bf16 %v923
        %v1088 = vunpack.c.h.bf16 %v923
        %v1089 = vunpack.c.l.bf16 %v924
        %v1090 = vunpack.c.h.bf16 %v924
        %v1091 = vunpack.c.l.bf16 %v925
        %v1092 = vunpack.c.h.bf16 %v925
        %v1093 = vunpack.c.l.bf16 %v926
        %v1094 = vunpack.c.h.bf16 %v926
        %v1095 = vunpack.c.l.bf16 %v927
        %v1096 = vunpack.c.h.bf16 %v927
        %v1097 = vunpack.c.l.bf16 %v928
        %v1098 = vunpack.c.h.bf16 %v928
        %v1099 = vunpack.c.l.bf16 %v929
        %v1100 = vunpack.c.h.bf16 %v929
        %v1101 = vunpack.c.l.bf16 %v930
        %v1102 = vunpack.c.h.bf16 %v930
        %v1103 = vunpack.c.l.bf16 %v931
        %v1104 = vunpack.c.h.bf16 %v931
        %v1105 = vunpack.c.l.bf16 %v932
        %v1106 = vunpack.c.h.bf16 %v932
        %v1107 = vunpack.c.l.bf16 %v933
        %v1108 = vunpack.c.h.bf16 %v933
        %v1109 = vunpack.c.l.bf16 %v934
        %v1110 = vunpack.c.h.bf16 %v934
        %v1111 = vunpack.c.l.bf16 %v935
        %v1112 = vunpack.c.h.bf16 %v935
        %v1113 = vunpack.c.l.bf16 %v936
        %v1114 = vunpack.c.h.bf16 %v936
        %v1115 = vunpack.c.l.bf16 %v937
        %v1116 = vunpack.c.h.bf16 %v937
        %v1117 = vunpack.c.l.bf16 %v938
        %v1118 = vunpack.c.h.bf16 %v938
        %v1119 = vunpack.c.l.bf16 %v939
        %v1120 = vunpack.c.h.bf16 %v939
        %v1121 = vunpack.c.l.bf16 %v940
        %v1122 = vunpack.c.h.bf16 %v940
        %v1123 = vunpack.c.l.bf16 %v941
        %v1124 = vunpack.c.h.bf16 %v941
        %v1125 = vunpack.c.l.bf16 %v942
        %v1126 = vunpack.c.h.bf16 %v942
        %v1127 = vunpack.c.l.bf16 %v943
        %v1128 = vunpack.c.h.bf16 %v943
        %v1129 = vunpack.c.l.bf16 %v944
        %v1130 = vunpack.c.h.bf16 %v944
        %v1131 = vunpack.c.l.bf16 %v945
        %v1132 = vunpack.c.h.bf16 %v945
        %v1133 = vunpack.c.l.bf16 %v946
        %v1134 = vunpack.c.h.bf16 %v946
        %v1135 = vunpack.c.l.bf16 %v947
        %v1136 = vunpack.c.h.bf16 %v947
        %v1137 = vunpack.c.l.bf16 %v948
        %v1138 = vunpack.c.h.bf16 %v948
        %v1139 = vunpack.c.l.bf16 %v949
        %v1140 = vunpack.c.h.bf16 %v949
        %v1141 = vunpack.c.l.bf16 %v950
        %v1142 = vunpack.c.h.bf16 %v950
        %v1143 = vld [vmem:[%s459] sm:$0xff]
        %v1144 = vld [vmem:[%s459 + $0x8] sm:$0xff]
        %v1145 = vld [vmem:[%s459 + $0x10] sm:$0xff]
        %v1146 = vld [vmem:[%s459 + $0x18] sm:$0xff]
        %v1147 = vld [vmem:[%s459 + $0x20] sm:$0xff]
        %v1148 = vld [vmem:[%s459 + $0x28] sm:$0xff]
        %v1149 = vld [vmem:[%s459 + $0x30] sm:$0xff]
        %v1150 = vld [vmem:[%s459 + $0x38] sm:$0xff]
        %v1151 = vld [vmem:[%s459 + $0x40] sm:$0xff]
        %v1152 = vld [vmem:[%s459 + $0x48] sm:$0xff]
        %v1153 = vld [vmem:[%s459 + $0x50] sm:$0xff]
        %v1154 = vld [vmem:[%s459 + $0x58] sm:$0xff]
        %v1155 = vld [vmem:[%s459 + $0x60] sm:$0xff]
        %v1156 = vld [vmem:[%s459 + $0x68] sm:$0xff]
        %v1157 = vld [vmem:[%s459 + $0x70] sm:$0xff]
        %v1158 = vld [vmem:[%s459 + $0x78] sm:$0xff]
        %v1159 = vld [vmem:[%s459 + $0x80] sm:$0xff]
        %v1160 = vld [vmem:[%s459 + $0x88] sm:$0xff]
        %v1161 = vld [vmem:[%s459 + $0x90] sm:$0xff]
        %v1162 = vld [vmem:[%s459 + $0x98] sm:$0xff]
        %v1163 = vld [vmem:[%s459 + $0xa0] sm:$0xff]
        %v1164 = vld [vmem:[%s459 + $0xa8] sm:$0xff]
        %v1165 = vld [vmem:[%s459 + $0xb0] sm:$0xff]
        %v1166 = vld [vmem:[%s459 + $0xb8] sm:$0xff]
        %v1167 = vld [vmem:[%s459 + $0xc0] sm:$0xff]
        %v1168 = vld [vmem:[%s459 + $0xc8] sm:$0xff]
        %v1169 = vld [vmem:[%s459 + $0xd0] sm:$0xff]
        %v1170 = vld [vmem:[%s459 + $0xd8] sm:$0xff]
        %v1171 = vld [vmem:[%s459 + $0xe0] sm:$0xff]
        %v1172 = vld [vmem:[%s459 + $0xe8] sm:$0xff]
        %v1173 = vld [vmem:[%s459 + $0xf0] sm:$0xff]
        %v1174 = vld [vmem:[%s459 + $0xf8] sm:$0xff]
        %v1175 = vld [vmem:[%s459 + $0x100] sm:$0xff]
        %v1176 = vld [vmem:[%s459 + $0x108] sm:$0xff]
        %v1177 = vld [vmem:[%s459 + $0x110] sm:$0xff]
        %v1178 = vld [vmem:[%s459 + $0x118] sm:$0xff]
        %v1179 = vld [vmem:[%s459 + $0x120] sm:$0xff]
        %v1180 = vld [vmem:[%s459 + $0x128] sm:$0xff]
        %v1181 = vld [vmem:[%s459 + $0x130] sm:$0xff]
        %v1182 = vld [vmem:[%s459 + $0x138] sm:$0xff]
        %v1183 = vld [vmem:[%s459 + $0x140] sm:$0xff]
        %v1184 = vld [vmem:[%s459 + $0x148] sm:$0xff]
        %v1185 = vld [vmem:[%s459 + $0x150] sm:$0xff]
        %v1186 = vld [vmem:[%s459 + $0x158] sm:$0xff]
        %v1187 = vld [vmem:[%s459 + $0x160] sm:$0xff]
        %v1188 = vld [vmem:[%s459 + $0x168] sm:$0xff]
        %v1189 = vld [vmem:[%s459 + $0x170] sm:$0xff]
        %v1190 = vld [vmem:[%s459 + $0x178] sm:$0xff]
        %v1191 = vld [vmem:[%s459 + $0x180] sm:$0xff]
        %v1192 = vld [vmem:[%s459 + $0x188] sm:$0xff]
        %v1193 = vld [vmem:[%s459 + $0x190] sm:$0xff]
        %v1194 = vld [vmem:[%s459 + $0x198] sm:$0xff]
        %v1195 = vld [vmem:[%s459 + $0x1a0] sm:$0xff]
        %v1196 = vld [vmem:[%s459 + $0x1a8] sm:$0xff]
        %v1197 = vld [vmem:[%s459 + $0x1b0] sm:$0xff]
        %v1198 = vld [vmem:[%s459 + $0x1b8] sm:$0xff]
        %v1199 = vld [vmem:[%s459 + $0x1c0] sm:$0xff]
        %v1200 = vld [vmem:[%s459 + $0x1c8] sm:$0xff]
        %v1201 = vld [vmem:[%s459 + $0x1d0] sm:$0xff]
        %v1202 = vld [vmem:[%s459 + $0x1d8] sm:$0xff]
        %v1203 = vld [vmem:[%s459 + $0x1e0] sm:$0xff]
        %v1204 = vld [vmem:[%s459 + $0x1e8] sm:$0xff]
        %v1205 = vld [vmem:[%s459 + $0x1f0] sm:$0xff]
        %v1206 = vld [vmem:[%s459 + $0x1f8] sm:$0xff]
        %v1207 = vld [vmem:[%s459 + $0x200] sm:$0xff]
        %v1208 = vld [vmem:[%s459 + $0x208] sm:$0xff]
        %v1209 = vld [vmem:[%s459 + $0x210] sm:$0xff]
        %v1210 = vld [vmem:[%s459 + $0x218] sm:$0xff]
        %v1211 = vld [vmem:[%s459 + $0x220] sm:$0xff]
        %v1212 = vld [vmem:[%s459 + $0x228] sm:$0xff]
        %v1213 = vld [vmem:[%s459 + $0x230] sm:$0xff]
        %v1214 = vld [vmem:[%s459 + $0x238] sm:$0xff]
        %v1215 = vld [vmem:[%s459 + $0x240] sm:$0xff]
        %v1216 = vld [vmem:[%s459 + $0x248] sm:$0xff]
        %v1217 = vld [vmem:[%s459 + $0x250] sm:$0xff]
        %v1218 = vld [vmem:[%s459 + $0x258] sm:$0xff]
        %v1219 = vld [vmem:[%s459 + $0x260] sm:$0xff]
        %v1220 = vld [vmem:[%s459 + $0x268] sm:$0xff]
        %v1221 = vld [vmem:[%s459 + $0x270] sm:$0xff]
        %v1222 = vld [vmem:[%s459 + $0x278] sm:$0xff]
        %v1223 = vld [vmem:[%s459 + $0x280] sm:$0xff]
        %v1224 = vld [vmem:[%s459 + $0x288] sm:$0xff]
        %v1225 = vld [vmem:[%s459 + $0x290] sm:$0xff]
        %v1226 = vld [vmem:[%s459 + $0x298] sm:$0xff]
        %v1227 = vld [vmem:[%s459 + $0x2a0] sm:$0xff]
        %v1228 = vld [vmem:[%s459 + $0x2a8] sm:$0xff]
        %v1229 = vld [vmem:[%s459 + $0x2b0] sm:$0xff]
        %v1230 = vld [vmem:[%s459 + $0x2b8] sm:$0xff]
        %v1231 = vld [vmem:[%s459 + $0x2c0] sm:$0xff]
        %v1232 = vld [vmem:[%s459 + $0x2c8] sm:$0xff]
        %v1233 = vld [vmem:[%s459 + $0x2d0] sm:$0xff]
        %v1234 = vld [vmem:[%s459 + $0x2d8] sm:$0xff]
        %v1235 = vld [vmem:[%s459 + $0x2e0] sm:$0xff]
        %v1236 = vld [vmem:[%s459 + $0x2e8] sm:$0xff]
        %v1237 = vld [vmem:[%s459 + $0x2f0] sm:$0xff]
        %v1238 = vld [vmem:[%s459 + $0x2f8] sm:$0xff]
        %v1239 = vunpack.c.l.bf16 %v1143
        %v1240 = vunpack.c.h.bf16 %v1143
        %v1241 = vunpack.c.l.bf16 %v1144
        %v1242 = vunpack.c.h.bf16 %v1144
        %v1243 = vunpack.c.l.bf16 %v1145
        %v1244 = vunpack.c.h.bf16 %v1145
        %v1245 = vunpack.c.l.bf16 %v1146
        %v1246 = vunpack.c.h.bf16 %v1146
        %v1247 = vunpack.c.l.bf16 %v1147
        %v1248 = vunpack.c.h.bf16 %v1147
        %v1249 = vunpack.c.l.bf16 %v1148
        %v1250 = vunpack.c.h.bf16 %v1148
        %v1251 = vunpack.c.l.bf16 %v1149
        %v1252 = vunpack.c.h.bf16 %v1149
        %v1253 = vunpack.c.l.bf16 %v1150
        %v1254 = vunpack.c.h.bf16 %v1150
        %v1255 = vunpack.c.l.bf16 %v1151
        %v1256 = vunpack.c.h.bf16 %v1151
        %v1257 = vunpack.c.l.bf16 %v1152
        %v1258 = vunpack.c.h.bf16 %v1152
        %v1259 = vunpack.c.l.bf16 %v1153
        %v1260 = vunpack.c.h.bf16 %v1153
        %v1261 = vunpack.c.l.bf16 %v1154
        %v1262 = vunpack.c.h.bf16 %v1154
        %v1263 = vunpack.c.l.bf16 %v1155
        %v1264 = vunpack.c.h.bf16 %v1155
        %v1265 = vunpack.c.l.bf16 %v1156
        %v1266 = vunpack.c.h.bf16 %v1156
        %v1267 = vunpack.c.l.bf16 %v1157
        %v1268 = vunpack.c.h.bf16 %v1157
        %v1269 = vunpack.c.l.bf16 %v1158
        %v1270 = vunpack.c.h.bf16 %v1158
        %v1271 = vunpack.c.l.bf16 %v1159
        %v1272 = vunpack.c.h.bf16 %v1159
        %v1273 = vunpack.c.l.bf16 %v1160
        %v1274 = vunpack.c.h.bf16 %v1160
        %v1275 = vunpack.c.l.bf16 %v1161
        %v1276 = vunpack.c.h.bf16 %v1161
        %v1277 = vunpack.c.l.bf16 %v1162
        %v1278 = vunpack.c.h.bf16 %v1162
        %v1279 = vunpack.c.l.bf16 %v1163
        %v1280 = vunpack.c.h.bf16 %v1163
        %v1281 = vunpack.c.l.bf16 %v1164
        %v1282 = vunpack.c.h.bf16 %v1164
        %v1283 = vunpack.c.l.bf16 %v1165
        %v1284 = vunpack.c.h.bf16 %v1165
        %v1285 = vunpack.c.l.bf16 %v1166
        %v1286 = vunpack.c.h.bf16 %v1166
        %v1287 = vunpack.c.l.bf16 %v1167
        %v1288 = vunpack.c.h.bf16 %v1167
        %v1289 = vunpack.c.l.bf16 %v1168
        %v1290 = vunpack.c.h.bf16 %v1168
        %v1291 = vunpack.c.l.bf16 %v1169
        %v1292 = vunpack.c.h.bf16 %v1169
        %v1293 = vunpack.c.l.bf16 %v1170
        %v1294 = vunpack.c.h.bf16 %v1170
        %v1295 = vunpack.c.l.bf16 %v1171
        %v1296 = vunpack.c.h.bf16 %v1171
        %v1297 = vunpack.c.l.bf16 %v1172
        %v1298 = vunpack.c.h.bf16 %v1172
        %v1299 = vunpack.c.l.bf16 %v1173
        %v1300 = vunpack.c.h.bf16 %v1173
        %v1301 = vunpack.c.l.bf16 %v1174
        %v1302 = vunpack.c.h.bf16 %v1174
        %v1303 = vunpack.c.l.bf16 %v1175
        %v1304 = vunpack.c.h.bf16 %v1175
        %v1305 = vunpack.c.l.bf16 %v1176
        %v1306 = vunpack.c.h.bf16 %v1176
        %v1307 = vunpack.c.l.bf16 %v1177
        %v1308 = vunpack.c.h.bf16 %v1177
        %v1309 = vunpack.c.l.bf16 %v1178
        %v1310 = vunpack.c.h.bf16 %v1178
        %v1311 = vunpack.c.l.bf16 %v1179
        %v1312 = vunpack.c.h.bf16 %v1179
        %v1313 = vunpack.c.l.bf16 %v1180
        %v1314 = vunpack.c.h.bf16 %v1180
        %v1315 = vunpack.c.l.bf16 %v1181
        %v1316 = vunpack.c.h.bf16 %v1181
        %v1317 = vunpack.c.l.bf16 %v1182
        %v1318 = vunpack.c.h.bf16 %v1182
        %v1319 = vunpack.c.l.bf16 %v1183
        %v1320 = vunpack.c.h.bf16 %v1183
        %v1321 = vunpack.c.l.bf16 %v1184
        %v1322 = vunpack.c.h.bf16 %v1184
        %v1323 = vunpack.c.l.bf16 %v1185
        %v1324 = vunpack.c.h.bf16 %v1185
        %v1325 = vunpack.c.l.bf16 %v1186
        %v1326 = vunpack.c.h.bf16 %v1186
        %v1327 = vunpack.c.l.bf16 %v1187
        %v1328 = vunpack.c.h.bf16 %v1187
        %v1329 = vunpack.c.l.bf16 %v1188
        %v1330 = vunpack.c.h.bf16 %v1188
        %v1331 = vunpack.c.l.bf16 %v1189
        %v1332 = vunpack.c.h.bf16 %v1189
        %v1333 = vunpack.c.l.bf16 %v1190
        %v1334 = vunpack.c.h.bf16 %v1190
        %v1335 = vunpack.c.l.bf16 %v1191
        %v1336 = vunpack.c.h.bf16 %v1191
        %v1337 = vunpack.c.l.bf16 %v1192
        %v1338 = vunpack.c.h.bf16 %v1192
        %v1339 = vunpack.c.l.bf16 %v1193
        %v1340 = vunpack.c.h.bf16 %v1193
        %v1341 = vunpack.c.l.bf16 %v1194
        %v1342 = vunpack.c.h.bf16 %v1194
        %v1343 = vunpack.c.l.bf16 %v1195
        %v1344 = vunpack.c.h.bf16 %v1195
        %v1345 = vunpack.c.l.bf16 %v1196
        %v1346 = vunpack.c.h.bf16 %v1196
        %v1347 = vunpack.c.l.bf16 %v1197
        %v1348 = vunpack.c.h.bf16 %v1197
        %v1349 = vunpack.c.l.bf16 %v1198
        %v1350 = vunpack.c.h.bf16 %v1198
        %v1351 = vunpack.c.l.bf16 %v1199
        %v1352 = vunpack.c.h.bf16 %v1199
        %v1353 = vunpack.c.l.bf16 %v1200
        %v1354 = vunpack.c.h.bf16 %v1200
        %v1355 = vunpack.c.l.bf16 %v1201
        %v1356 = vunpack.c.h.bf16 %v1201
        %v1357 = vunpack.c.l.bf16 %v1202
        %v1358 = vunpack.c.h.bf16 %v1202
        %v1359 = vunpack.c.l.bf16 %v1203
        %v1360 = vunpack.c.h.bf16 %v1203
        %v1361 = vunpack.c.l.bf16 %v1204
        %v1362 = vunpack.c.h.bf16 %v1204
        %v1363 = vunpack.c.l.bf16 %v1205
        %v1364 = vunpack.c.h.bf16 %v1205
        %v1365 = vunpack.c.l.bf16 %v1206
        %v1366 = vunpack.c.h.bf16 %v1206
        %v1367 = vunpack.c.l.bf16 %v1207
        %v1368 = vunpack.c.h.bf16 %v1207
        %v1369 = vunpack.c.l.bf16 %v1208
        %v1370 = vunpack.c.h.bf16 %v1208
        %v1371 = vunpack.c.l.bf16 %v1209
        %v1372 = vunpack.c.h.bf16 %v1209
        %v1373 = vunpack.c.l.bf16 %v1210
        %v1374 = vunpack.c.h.bf16 %v1210
        %v1375 = vunpack.c.l.bf16 %v1211
        %v1376 = vunpack.c.h.bf16 %v1211
        %v1377 = vunpack.c.l.bf16 %v1212
        %v1378 = vunpack.c.h.bf16 %v1212
        %v1379 = vunpack.c.l.bf16 %v1213
        %v1380 = vunpack.c.h.bf16 %v1213
        %v1381 = vunpack.c.l.bf16 %v1214
        %v1382 = vunpack.c.h.bf16 %v1214
        %v1383 = vunpack.c.l.bf16 %v1215
        %v1384 = vunpack.c.h.bf16 %v1215
        %v1385 = vunpack.c.l.bf16 %v1216
        %v1386 = vunpack.c.h.bf16 %v1216
        %v1387 = vunpack.c.l.bf16 %v1217
        %v1388 = vunpack.c.h.bf16 %v1217
        %v1389 = vunpack.c.l.bf16 %v1218
        %v1390 = vunpack.c.h.bf16 %v1218
        %v1391 = vunpack.c.l.bf16 %v1219
        %v1392 = vunpack.c.h.bf16 %v1219
        %v1393 = vunpack.c.l.bf16 %v1220
        %v1394 = vunpack.c.h.bf16 %v1220
        %v1395 = vunpack.c.l.bf16 %v1221
        %v1396 = vunpack.c.h.bf16 %v1221
        %v1397 = vunpack.c.l.bf16 %v1222
        %v1398 = vunpack.c.h.bf16 %v1222
        %v1399 = vunpack.c.l.bf16 %v1223
        %v1400 = vunpack.c.h.bf16 %v1223
        %v1401 = vunpack.c.l.bf16 %v1224
        %v1402 = vunpack.c.h.bf16 %v1224
        %v1403 = vunpack.c.l.bf16 %v1225
        %v1404 = vunpack.c.h.bf16 %v1225
        %v1405 = vunpack.c.l.bf16 %v1226
        %v1406 = vunpack.c.h.bf16 %v1226
        %v1407 = vunpack.c.l.bf16 %v1227
        %v1408 = vunpack.c.h.bf16 %v1227
        %v1409 = vunpack.c.l.bf16 %v1228
        %v1410 = vunpack.c.h.bf16 %v1228
        %v1411 = vunpack.c.l.bf16 %v1229
        %v1412 = vunpack.c.h.bf16 %v1229
        %v1413 = vunpack.c.l.bf16 %v1230
        %v1414 = vunpack.c.h.bf16 %v1230
        %v1415 = vunpack.c.l.bf16 %v1231
        %v1416 = vunpack.c.h.bf16 %v1231
        %v1417 = vunpack.c.l.bf16 %v1232
        %v1418 = vunpack.c.h.bf16 %v1232
        %v1419 = vunpack.c.l.bf16 %v1233
        %v1420 = vunpack.c.h.bf16 %v1233
        %v1421 = vunpack.c.l.bf16 %v1234
        %v1422 = vunpack.c.h.bf16 %v1234
        %v1423 = vunpack.c.l.bf16 %v1235
        %v1424 = vunpack.c.h.bf16 %v1235
        %v1425 = vunpack.c.l.bf16 %v1236
        %v1426 = vunpack.c.h.bf16 %v1236
        %v1427 = vunpack.c.l.bf16 %v1237
        %v1428 = vunpack.c.h.bf16 %v1237
        %v1429 = vunpack.c.l.bf16 %v1238
        %v1430 = vunpack.c.h.bf16 %v1238
        %v1431 = vmul.f32 %v951, %v1239
        %v1432 = vmul.f32 %v952, %v1240
        %v1433 = vmul.f32 %v953, %v1241
        %v1434 = vmul.f32 %v954, %v1242
        %v1435 = vmul.f32 %v955, %v1243
        %v1436 = vmul.f32 %v956, %v1244
        %v1437 = vmul.f32 %v957, %v1245
        %v1438 = vmul.f32 %v958, %v1246
        %v1439 = vmul.f32 %v959, %v1247
        %v1440 = vmul.f32 %v960, %v1248
        %v1441 = vmul.f32 %v961, %v1249
        %v1442 = vmul.f32 %v962, %v1250
        %v1443 = vmul.f32 %v963, %v1251
        %v1444 = vmul.f32 %v964, %v1252
        %v1445 = vmul.f32 %v965, %v1253
        %v1446 = vmul.f32 %v966, %v1254
        %v1447 = vmul.f32 %v967, %v1255
        %v1448 = vmul.f32 %v968, %v1256
        %v1449 = vmul.f32 %v969, %v1257
        %v1450 = vmul.f32 %v970, %v1258
        %v1451 = vmul.f32 %v971, %v1259
        %v1452 = vmul.f32 %v972, %v1260
        %v1453 = vmul.f32 %v973, %v1261
        %v1454 = vmul.f32 %v974, %v1262
        %v1455 = vmul.f32 %v975, %v1263
        %v1456 = vmul.f32 %v976, %v1264
        %v1457 = vmul.f32 %v977, %v1265
        %v1458 = vmul.f32 %v978, %v1266
        %v1459 = vmul.f32 %v979, %v1267
        %v1460 = vmul.f32 %v980, %v1268
        %v1461 = vmul.f32 %v981, %v1269
        %v1462 = vmul.f32 %v982, %v1270
        %v1463 = vmul.f32 %v983, %v1271
        %v1464 = vmul.f32 %v984, %v1272
        %v1465 = vmul.f32 %v985, %v1273
        %v1466 = vmul.f32 %v986, %v1274
        %v1467 = vmul.f32 %v987, %v1275
        %v1468 = vmul.f32 %v988, %v1276
        %v1469 = vmul.f32 %v989, %v1277
        %v1470 = vmul.f32 %v990, %v1278
        %v1471 = vmul.f32 %v991, %v1279
        %v1472 = vmul.f32 %v992, %v1280
        %v1473 = vmul.f32 %v993, %v1281
        %v1474 = vmul.f32 %v994, %v1282
        %v1475 = vmul.f32 %v995, %v1283
        %v1476 = vmul.f32 %v996, %v1284
        %v1477 = vmul.f32 %v997, %v1285
        %v1478 = vmul.f32 %v998, %v1286
        %v1479 = vmul.f32 %v999, %v1287
        %v1480 = vmul.f32 %v1000, %v1288
        %v1481 = vmul.f32 %v1001, %v1289
        %v1482 = vmul.f32 %v1002, %v1290
        %v1483 = vmul.f32 %v1003, %v1291
        %v1484 = vmul.f32 %v1004, %v1292
        %v1485 = vmul.f32 %v1005, %v1293
        %v1486 = vmul.f32 %v1006, %v1294
        %v1487 = vmul.f32 %v1007, %v1295
        %v1488 = vmul.f32 %v1008, %v1296
        %v1489 = vmul.f32 %v1009, %v1297
        %v1490 = vmul.f32 %v1010, %v1298
        %v1491 = vmul.f32 %v1011, %v1299
        %v1492 = vmul.f32 %v1012, %v1300
        %v1493 = vmul.f32 %v1013, %v1301
        %v1494 = vmul.f32 %v1014, %v1302
        %v1495 = vmul.f32 %v1015, %v1303
        %v1496 = vmul.f32 %v1016, %v1304
        %v1497 = vmul.f32 %v1017, %v1305
        %v1498 = vmul.f32 %v1018, %v1306
        %v1499 = vmul.f32 %v1019, %v1307
        %v1500 = vmul.f32 %v1020, %v1308
        %v1501 = vmul.f32 %v1021, %v1309
        %v1502 = vmul.f32 %v1022, %v1310
        %v1503 = vmul.f32 %v1023, %v1311
        %v1504 = vmul.f32 %v1024, %v1312
        %v1505 = vmul.f32 %v1025, %v1313
        %v1506 = vmul.f32 %v1026, %v1314
        %v1507 = vmul.f32 %v1027, %v1315
        %v1508 = vmul.f32 %v1028, %v1316
        %v1509 = vmul.f32 %v1029, %v1317
        %v1510 = vmul.f32 %v1030, %v1318
        %v1511 = vmul.f32 %v1031, %v1319
        %v1512 = vmul.f32 %v1032, %v1320
        %v1513 = vmul.f32 %v1033, %v1321
        %v1514 = vmul.f32 %v1034, %v1322
        %v1515 = vmul.f32 %v1035, %v1323
        %v1516 = vmul.f32 %v1036, %v1324
        %v1517 = vmul.f32 %v1037, %v1325
        %v1518 = vmul.f32 %v1038, %v1326
        %v1519 = vmul.f32 %v1039, %v1327
        %v1520 = vmul.f32 %v1040, %v1328
        %v1521 = vmul.f32 %v1041, %v1329
        %v1522 = vmul.f32 %v1042, %v1330
        %v1523 = vmul.f32 %v1043, %v1331
        %v1524 = vmul.f32 %v1044, %v1332
        %v1525 = vmul.f32 %v1045, %v1333
        %v1526 = vmul.f32 %v1046, %v1334
        %v1527 = vmul.f32 %v1047, %v1335
        %v1528 = vmul.f32 %v1048, %v1336
        %v1529 = vmul.f32 %v1049, %v1337
        %v1530 = vmul.f32 %v1050, %v1338
        %v1531 = vmul.f32 %v1051, %v1339
        %v1532 = vmul.f32 %v1052, %v1340
        %v1533 = vmul.f32 %v1053, %v1341
        %v1534 = vmul.f32 %v1054, %v1342
        %v1535 = vmul.f32 %v1055, %v1343
        %v1536 = vmul.f32 %v1056, %v1344
        %v1537 = vmul.f32 %v1057, %v1345
        %v1538 = vmul.f32 %v1058, %v1346
        %v1539 = vmul.f32 %v1059, %v1347
        %v1540 = vmul.f32 %v1060, %v1348
        %v1541 = vmul.f32 %v1061, %v1349
        %v1542 = vmul.f32 %v1062, %v1350
        %v1543 = vmul.f32 %v1063, %v1351
        %v1544 = vmul.f32 %v1064, %v1352
        %v1545 = vmul.f32 %v1065, %v1353
        %v1546 = vmul.f32 %v1066, %v1354
        %v1547 = vmul.f32 %v1067, %v1355
        %v1548 = vmul.f32 %v1068, %v1356
        %v1549 = vmul.f32 %v1069, %v1357
        %v1550 = vmul.f32 %v1070, %v1358
        %v1551 = vmul.f32 %v1071, %v1359
        %v1552 = vmul.f32 %v1072, %v1360
        %v1553 = vmul.f32 %v1073, %v1361
        %v1554 = vmul.f32 %v1074, %v1362
        %v1555 = vmul.f32 %v1075, %v1363
        %v1556 = vmul.f32 %v1076, %v1364
        %v1557 = vmul.f32 %v1077, %v1365
        %v1558 = vmul.f32 %v1078, %v1366
        %v1559 = vmul.f32 %v1079, %v1367
        %v1560 = vmul.f32 %v1080, %v1368
        %v1561 = vmul.f32 %v1081, %v1369
        %v1562 = vmul.f32 %v1082, %v1370
        %v1563 = vmul.f32 %v1083, %v1371
        %v1564 = vmul.f32 %v1084, %v1372
        %v1565 = vmul.f32 %v1085, %v1373
        %v1566 = vmul.f32 %v1086, %v1374
        %v1567 = vmul.f32 %v1087, %v1375
        %v1568 = vmul.f32 %v1088, %v1376
        %v1569 = vmul.f32 %v1089, %v1377
        %v1570 = vmul.f32 %v1090, %v1378
        %v1571 = vmul.f32 %v1091, %v1379
        %v1572 = vmul.f32 %v1092, %v1380
        %v1573 = vmul.f32 %v1093, %v1381
        %v1574 = vmul.f32 %v1094, %v1382
        %v1575 = vmul.f32 %v1095, %v1383
        %v1576 = vmul.f32 %v1096, %v1384
        %v1577 = vmul.f32 %v1097, %v1385
        %v1578 = vmul.f32 %v1098, %v1386
        %v1579 = vmul.f32 %v1099, %v1387
        %v1580 = vmul.f32 %v1100, %v1388
        %v1581 = vmul.f32 %v1101, %v1389
        %v1582 = vmul.f32 %v1102, %v1390
        %v1583 = vmul.f32 %v1103, %v1391
        %v1584 = vmul.f32 %v1104, %v1392
        %v1585 = vmul.f32 %v1105, %v1393
        %v1586 = vmul.f32 %v1106, %v1394
        %v1587 = vmul.f32 %v1107, %v1395
        %v1588 = vmul.f32 %v1108, %v1396
        %v1589 = vmul.f32 %v1109, %v1397
        %v1590 = vmul.f32 %v1110, %v1398
        %v1591 = vmul.f32 %v1111, %v1399
        %v1592 = vmul.f32 %v1112, %v1400
        %v1593 = vmul.f32 %v1113, %v1401
        %v1594 = vmul.f32 %v1114, %v1402
        %v1595 = vmul.f32 %v1115, %v1403
        %v1596 = vmul.f32 %v1116, %v1404
        %v1597 = vmul.f32 %v1117, %v1405
        %v1598 = vmul.f32 %v1118, %v1406
        %v1599 = vmul.f32 %v1119, %v1407
        %v1600 = vmul.f32 %v1120, %v1408
        %v1601 = vmul.f32 %v1121, %v1409
        %v1602 = vmul.f32 %v1122, %v1410
        %v1603 = vmul.f32 %v1123, %v1411
        %v1604 = vmul.f32 %v1124, %v1412
        %v1605 = vmul.f32 %v1125, %v1413
        %v1606 = vmul.f32 %v1126, %v1414
        %v1607 = vmul.f32 %v1127, %v1415
        %v1608 = vmul.f32 %v1128, %v1416
        %v1609 = vmul.f32 %v1129, %v1417
        %v1610 = vmul.f32 %v1130, %v1418
        %v1611 = vmul.f32 %v1131, %v1419
        %v1612 = vmul.f32 %v1132, %v1420
        %v1613 = vmul.f32 %v1133, %v1421
        %v1614 = vmul.f32 %v1134, %v1422
        %v1615 = vmul.f32 %v1135, %v1423
        %v1616 = vmul.f32 %v1136, %v1424
        %v1617 = vmul.f32 %v1137, %v1425
        %v1618 = vmul.f32 %v1138, %v1426
        %v1619 = vmul.f32 %v1139, %v1427
        %v1620 = vmul.f32 %v1140, %v1428
        %v1621 = vmul.f32 %v1141, %v1429
        %v1622 = vmul.f32 %v1142, %v1430
        %v1623 = vadd.f32 %v663, %v1431
        %v1624 = vadd.f32 %v664, %v1432
        %v1625 = vadd.f32 %v665, %v1433
        %v1626 = vadd.f32 %v666, %v1434
        %v1627 = vadd.f32 %v667, %v1435
        %v1628 = vadd.f32 %v668, %v1436
        %v1629 = vadd.f32 %v669, %v1437
        %v1630 = vadd.f32 %v670, %v1438
        %v1631 = vadd.f32 %v671, %v1439
        %v1632 = vadd.f32 %v672, %v1440
        %v1633 = vadd.f32 %v673, %v1441
        %v1634 = vadd.f32 %v674, %v1442
        %v1635 = vadd.f32 %v675, %v1443
        %v1636 = vadd.f32 %v676, %v1444
        %v1637 = vadd.f32 %v677, %v1445
        %v1638 = vadd.f32 %v678, %v1446
        %v1639 = vadd.f32 %v679, %v1447
        %v1640 = vadd.f32 %v680, %v1448
        %v1641 = vadd.f32 %v681, %v1449
        %v1642 = vadd.f32 %v682, %v1450
        %v1643 = vadd.f32 %v683, %v1451
        %v1644 = vadd.f32 %v684, %v1452
        %v1645 = vadd.f32 %v685, %v1453
        %v1646 = vadd.f32 %v686, %v1454
        %v1647 = vadd.f32 %v687, %v1455
        %v1648 = vadd.f32 %v688, %v1456
        %v1649 = vadd.f32 %v689, %v1457
        %v1650 = vadd.f32 %v690, %v1458
        %v1651 = vadd.f32 %v691, %v1459
        %v1652 = vadd.f32 %v692, %v1460
        %v1653 = vadd.f32 %v693, %v1461
        %v1654 = vadd.f32 %v694, %v1462
        %v1655 = vadd.f32 %v695, %v1463
        %v1656 = vadd.f32 %v696, %v1464
        %v1657 = vadd.f32 %v697, %v1465
        %v1658 = vadd.f32 %v698, %v1466
        %v1659 = vadd.f32 %v699, %v1467
        %v1660 = vadd.f32 %v700, %v1468
        %v1661 = vadd.f32 %v701, %v1469
        %v1662 = vadd.f32 %v702, %v1470
        %v1663 = vadd.f32 %v703, %v1471
        %v1664 = vadd.f32 %v704, %v1472
        %v1665 = vadd.f32 %v705, %v1473
        %v1666 = vadd.f32 %v706, %v1474
        %v1667 = vadd.f32 %v707, %v1475
        %v1668 = vadd.f32 %v708, %v1476
        %v1669 = vadd.f32 %v709, %v1477
        %v1670 = vadd.f32 %v710, %v1478
        %v1671 = vadd.f32 %v711, %v1479
        %v1672 = vadd.f32 %v712, %v1480
        %v1673 = vadd.f32 %v713, %v1481
        %v1674 = vadd.f32 %v714, %v1482
        %v1675 = vadd.f32 %v715, %v1483
        %v1676 = vadd.f32 %v716, %v1484
        %v1677 = vadd.f32 %v717, %v1485
        %v1678 = vadd.f32 %v718, %v1486
        %v1679 = vadd.f32 %v719, %v1487
        %v1680 = vadd.f32 %v720, %v1488
        %v1681 = vadd.f32 %v721, %v1489
        %v1682 = vadd.f32 %v722, %v1490
        %v1683 = vadd.f32 %v723, %v1491
        %v1684 = vadd.f32 %v724, %v1492
        %v1685 = vadd.f32 %v725, %v1493
        %v1686 = vadd.f32 %v726, %v1494
        %v1687 = vadd.f32 %v727, %v1495
        %v1688 = vadd.f32 %v728, %v1496
        %v1689 = vadd.f32 %v729, %v1497
        %v1690 = vadd.f32 %v730, %v1498
        %v1691 = vadd.f32 %v731, %v1499
        %v1692 = vadd.f32 %v732, %v1500
        %v1693 = vadd.f32 %v733, %v1501
        %v1694 = vadd.f32 %v734, %v1502
        %v1695 = vadd.f32 %v735, %v1503
        %v1696 = vadd.f32 %v736, %v1504
        %v1697 = vadd.f32 %v737, %v1505
        %v1698 = vadd.f32 %v738, %v1506
        %v1699 = vadd.f32 %v739, %v1507
        %v1700 = vadd.f32 %v740, %v1508
        %v1701 = vadd.f32 %v741, %v1509
        %v1702 = vadd.f32 %v742, %v1510
        %v1703 = vadd.f32 %v743, %v1511
        %v1704 = vadd.f32 %v744, %v1512
        %v1705 = vadd.f32 %v745, %v1513
        %v1706 = vadd.f32 %v746, %v1514
        %v1707 = vadd.f32 %v747, %v1515
        %v1708 = vadd.f32 %v748, %v1516
        %v1709 = vadd.f32 %v749, %v1517
        %v1710 = vadd.f32 %v750, %v1518
        %v1711 = vadd.f32 %v751, %v1519
        %v1712 = vadd.f32 %v752, %v1520
        %v1713 = vadd.f32 %v753, %v1521
        %v1714 = vadd.f32 %v754, %v1522
        %v1715 = vadd.f32 %v755, %v1523
        %v1716 = vadd.f32 %v756, %v1524
        %v1717 = vadd.f32 %v757, %v1525
        %v1718 = vadd.f32 %v758, %v1526
        %v1719 = vadd.f32 %v759, %v1527
        %v1720 = vadd.f32 %v760, %v1528
        %v1721 = vadd.f32 %v761, %v1529
        %v1722 = vadd.f32 %v762, %v1530
        %v1723 = vadd.f32 %v763, %v1531
        %v1724 = vadd.f32 %v764, %v1532
        %v1725 = vadd.f32 %v765, %v1533
        %v1726 = vadd.f32 %v766, %v1534
        %v1727 = vadd.f32 %v767, %v1535
        %v1728 = vadd.f32 %v768, %v1536
        %v1729 = vadd.f32 %v769, %v1537
        %v1730 = vadd.f32 %v770, %v1538
        %v1731 = vadd.f32 %v771, %v1539
        %v1732 = vadd.f32 %v772, %v1540
        %v1733 = vadd.f32 %v773, %v1541
        %v1734 = vadd.f32 %v774, %v1542
        %v1735 = vadd.f32 %v775, %v1543
        %v1736 = vadd.f32 %v776, %v1544
        %v1737 = vadd.f32 %v777, %v1545
        %v1738 = vadd.f32 %v778, %v1546
        %v1739 = vadd.f32 %v779, %v1547
        %v1740 = vadd.f32 %v780, %v1548
        %v1741 = vadd.f32 %v781, %v1549
        %v1742 = vadd.f32 %v782, %v1550
        %v1743 = vadd.f32 %v783, %v1551
        %v1744 = vadd.f32 %v784, %v1552
        %v1745 = vadd.f32 %v785, %v1553
        %v1746 = vadd.f32 %v786, %v1554
        %v1747 = vadd.f32 %v787, %v1555
        %v1748 = vadd.f32 %v788, %v1556
        %v1749 = vadd.f32 %v789, %v1557
        %v1750 = vadd.f32 %v790, %v1558
        %v1751 = vadd.f32 %v791, %v1559
        %v1752 = vadd.f32 %v792, %v1560
        %v1753 = vadd.f32 %v793, %v1561
        %v1754 = vadd.f32 %v794, %v1562
        %v1755 = vadd.f32 %v795, %v1563
        %v1756 = vadd.f32 %v796, %v1564
        %v1757 = vadd.f32 %v797, %v1565
        %v1758 = vadd.f32 %v798, %v1566
        %v1759 = vadd.f32 %v799, %v1567
        %v1760 = vadd.f32 %v800, %v1568
        %v1761 = vadd.f32 %v801, %v1569
        %v1762 = vadd.f32 %v802, %v1570
        %v1763 = vadd.f32 %v803, %v1571
        %v1764 = vadd.f32 %v804, %v1572
        %v1765 = vadd.f32 %v805, %v1573
        %v1766 = vadd.f32 %v806, %v1574
        %v1767 = vadd.f32 %v807, %v1575
        %v1768 = vadd.f32 %v808, %v1576
        %v1769 = vadd.f32 %v809, %v1577
        %v1770 = vadd.f32 %v810, %v1578
        %v1771 = vadd.f32 %v811, %v1579
        %v1772 = vadd.f32 %v812, %v1580
        %v1773 = vadd.f32 %v813, %v1581
        %v1774 = vadd.f32 %v814, %v1582
        %v1775 = vadd.f32 %v815, %v1583
        %v1776 = vadd.f32 %v816, %v1584
        %v1777 = vadd.f32 %v817, %v1585
        %v1778 = vadd.f32 %v818, %v1586
        %v1779 = vadd.f32 %v819, %v1587
        %v1780 = vadd.f32 %v820, %v1588
        %v1781 = vadd.f32 %v821, %v1589
        %v1782 = vadd.f32 %v822, %v1590
        %v1783 = vadd.f32 %v823, %v1591
        %v1784 = vadd.f32 %v824, %v1592
        %v1785 = vadd.f32 %v825, %v1593
        %v1786 = vadd.f32 %v826, %v1594
        %v1787 = vadd.f32 %v827, %v1595
        %v1788 = vadd.f32 %v828, %v1596
        %v1789 = vadd.f32 %v829, %v1597
        %v1790 = vadd.f32 %v830, %v1598
        %v1791 = vadd.f32 %v831, %v1599
        %v1792 = vadd.f32 %v832, %v1600
        %v1793 = vadd.f32 %v833, %v1601
        %v1794 = vadd.f32 %v834, %v1602
        %v1795 = vadd.f32 %v835, %v1603
        %v1796 = vadd.f32 %v836, %v1604
        %v1797 = vadd.f32 %v837, %v1605
        %v1798 = vadd.f32 %v838, %v1606
        %v1799 = vadd.f32 %v839, %v1607
        %v1800 = vadd.f32 %v840, %v1608
        %v1801 = vadd.f32 %v841, %v1609
        %v1802 = vadd.f32 %v842, %v1610
        %v1803 = vadd.f32 %v843, %v1611
        %v1804 = vadd.f32 %v844, %v1612
        %v1805 = vadd.f32 %v845, %v1613
        %v1806 = vadd.f32 %v846, %v1614
        %v1807 = vadd.f32 %v847, %v1615
        %v1808 = vadd.f32 %v848, %v1616
        %v1809 = vadd.f32 %v849, %v1617
        %v1810 = vadd.f32 %v850, %v1618
        %v1811 = vadd.f32 %v851, %v1619
        %v1812 = vadd.f32 %v852, %v1620
        %v1813 = vadd.f32 %v853, %v1621
        %v1814 = vadd.f32 %v854, %v1622
        %v1815 = vld [vmem:[#allocation2] sm:$0xff]
        %v1816 = vld [vmem:[#allocation2 + $0x8] sm:$0xff]
        %v1817 = vld [vmem:[#allocation2 + $0x10] sm:$0xff]
        %v1818 = vld [vmem:[#allocation2 + $0x18] sm:$0xff]
        %v1819 = vld [vmem:[%s432] sm:$0xff]
        %v1820 = vld [vmem:[%s432 + $0x8] sm:$0xff]
        %v1821 = vld [vmem:[%s432 + $0x10] sm:$0xff]
        %v1822 = vpack.c.bf16 %v1819, %v1819
        %v1823 = vpack.c.bf16 %v1820, %v1820
        %v1824 = vpack.c.bf16 %v1821, %v1821
        %v1825 = vpack.c.bf16 %v1627, %v1623
        %v1826 = vpack.c.bf16 %v1628, %v1624
        %v1827 = vpack.c.bf16 %v1629, %v1625
        %v1828 = vpack.c.bf16 %v1630, %v1626
        %v1829 = vpack.c.bf16 %v1635, %v1631
        %v1830 = vpack.c.bf16 %v1636, %v1632
        %v1831 = vpack.c.bf16 %v1637, %v1633
        %v1832 = vpack.c.bf16 %v1638, %v1634
        %v1833 = vpack.c.bf16 %v1643, %v1639
        %v1834 = vpack.c.bf16 %v1644, %v1640
        %v1835 = vpack.c.bf16 %v1645, %v1641
        %v1836 = vpack.c.bf16 %v1646, %v1642
        %v1837 = vpack.c.bf16 %v1651, %v1647
        %v1838 = vpack.c.bf16 %v1652, %v1648
        %v1839 = vpack.c.bf16 %v1653, %v1649
        %v1840 = vpack.c.bf16 %v1654, %v1650
        %v1841 = vpack.c.bf16 %v1659, %v1655
        %v1842 = vpack.c.bf16 %v1660, %v1656
        %v1843 = vpack.c.bf16 %v1661, %v1657
        %v1844 = vpack.c.bf16 %v1662, %v1658
        %v1845 = vpack.c.bf16 %v1667, %v1663
        %v1846 = vpack.c.bf16 %v1668, %v1664
        %v1847 = vpack.c.bf16 %v1669, %v1665
        %v1848 = vpack.c.bf16 %v1670, %v1666
        %v1849 = vpack.c.bf16 %v1675, %v1671
        %v1850 = vpack.c.bf16 %v1676, %v1672
        %v1851 = vpack.c.bf16 %v1677, %v1673
        %v1852 = vpack.c.bf16 %v1678, %v1674
        %v1853 = vpack.c.bf16 %v1683, %v1679
        %v1854 = vpack.c.bf16 %v1684, %v1680
        %v1855 = vpack.c.bf16 %v1685, %v1681
        %v1856 = vpack.c.bf16 %v1686, %v1682
        %v1857 = vpack.c.bf16 %v1691, %v1687
        %v1858 = vpack.c.bf16 %v1692, %v1688
        %v1859 = vpack.c.bf16 %v1693, %v1689
        %v1860 = vpack.c.bf16 %v1694, %v1690
        %v1861 = vpack.c.bf16 %v1699, %v1695
        %v1862 = vpack.c.bf16 %v1700, %v1696
        %v1863 = vpack.c.bf16 %v1701, %v1697
        %v1864 = vpack.c.bf16 %v1702, %v1698
        %v1865 = vpack.c.bf16 %v1707, %v1703
        %v1866 = vpack.c.bf16 %v1708, %v1704
        %v1867 = vpack.c.bf16 %v1709, %v1705
        %v1868 = vpack.c.bf16 %v1710, %v1706
        %v1869 = vpack.c.bf16 %v1715, %v1711
        %v1870 = vpack.c.bf16 %v1716, %v1712
        %v1871 = vpack.c.bf16 %v1717, %v1713
        %v1872 = vpack.c.bf16 %v1718, %v1714
        %v1873 = vpack.c.bf16 %v1723, %v1719
        %v1874 = vpack.c.bf16 %v1724, %v1720
        %v1875 = vpack.c.bf16 %v1725, %v1721
        %v1876 = vpack.c.bf16 %v1726, %v1722
        %v1877 = vpack.c.bf16 %v1731, %v1727
        %v1878 = vpack.c.bf16 %v1732, %v1728
        %v1879 = vpack.c.bf16 %v1733, %v1729
        %v1880 = vpack.c.bf16 %v1734, %v1730
        %v1881 = vpack.c.bf16 %v1739, %v1735
        %v1882 = vpack.c.bf16 %v1740, %v1736
        %v1883 = vpack.c.bf16 %v1741, %v1737
        %v1884 = vpack.c.bf16 %v1742, %v1738
        %v1885 = vpack.c.bf16 %v1747, %v1743
        %v1886 = vpack.c.bf16 %v1748, %v1744
        %v1887 = vpack.c.bf16 %v1749, %v1745
        %v1888 = vpack.c.bf16 %v1750, %v1746
        %v1889 = vpack.c.bf16 %v1755, %v1751
        %v1890 = vpack.c.bf16 %v1756, %v1752
        %v1891 = vpack.c.bf16 %v1757, %v1753
        %v1892 = vpack.c.bf16 %v1758, %v1754
        %v1893 = vpack.c.bf16 %v1763, %v1759
        %v1894 = vpack.c.bf16 %v1764, %v1760
        %v1895 = vpack.c.bf16 %v1765, %v1761
        %v1896 = vpack.c.bf16 %v1766, %v1762
        %v1897 = vpack.c.bf16 %v1771, %v1767
        %v1898 = vpack.c.bf16 %v1772, %v1768
        %v1899 = vpack.c.bf16 %v1773, %v1769
        %v1900 = vpack.c.bf16 %v1774, %v1770
        %v1901 = vpack.c.bf16 %v1779, %v1775
        %v1902 = vpack.c.bf16 %v1780, %v1776
        %v1903 = vpack.c.bf16 %v1781, %v1777
        %v1904 = vpack.c.bf16 %v1782, %v1778
        %v1905 = vpack.c.bf16 %v1787, %v1783
        %v1906 = vpack.c.bf16 %v1788, %v1784
        %v1907 = vpack.c.bf16 %v1789, %v1785
        %v1908 = vpack.c.bf16 %v1790, %v1786
        %v1909 = vpack.c.bf16 %v1795, %v1791
        %v1910 = vpack.c.bf16 %v1796, %v1792
        %v1911 = vpack.c.bf16 %v1797, %v1793
        %v1912 = vpack.c.bf16 %v1798, %v1794
        %v1913 = vpack.c.bf16 %v1803, %v1799
        %v1914 = vpack.c.bf16 %v1804, %v1800
        %v1915 = vpack.c.bf16 %v1805, %v1801
        %v1916 = vpack.c.bf16 %v1806, %v1802
        %v1917 = vpack.c.bf16 %v1811, %v1807
        %v1918 = vpack.c.bf16 %v1812, %v1808
        %v1919 = vpack.c.bf16 %v1813, %v1809
        %v1920 = vpack.c.bf16 %v1814, %v1810
        %1921 = vmatprep.subr.bf16.mxu0 %v1826
        %1922 = vmatpush1.bf16.msra.mxu0 %v1825
        %1923 = vmatprep.subr.bf16.mxu0 %v1830
        %1924 = vmatpush1.bf16.msra.mxu0 %v1829
        %1925 = vmatprep.subr.bf16.mxu0 %v1834
        %1926 = vmatpush1.bf16.msra.mxu0 %v1833
        %1927 = vmatprep.subr.bf16.mxu0 %v1838
        %1928 = vmatpush1.bf16.msra.mxu0 %v1837
        %1929 = vmatprep.subr.bf16.mxu0 %v1842
        %1930 = vmatpush1.bf16.msra.mxu0 %v1841
        %1931 = vmatprep.subr.bf16.mxu0 %v1846
        %1932 = vmatpush1.bf16.msra.mxu0 %v1845
        %1933 = vmatprep.subr.bf16.mxu0 %v1850
        %1934 = vmatpush1.bf16.msra.mxu0 %v1849
        %1935 = vmatprep.subr.bf16.mxu0 %v1854
        %1936 = vmatpush1.bf16.msra.mxu0 %v1853
        %1937 = vmatprep.subr.bf16.mxu0 %v1858
        %1938 = vmatpush1.bf16.msra.mxu0 %v1857
        %1939 = vmatprep.subr.bf16.mxu0 %v1862
        %1940 = vmatpush1.bf16.msra.mxu0 %v1861
        %1941 = vmatprep.subr.bf16.mxu0 %v1866
        %1942 = vmatpush1.bf16.msra.mxu0 %v1865
        %1943 = vmatprep.subr.bf16.mxu0 %v1870
        %1944 = vmatpush1.bf16.msra.mxu0 %v1869
        %1945 = vmatprep.subr.bf16.mxu0 %v1874
        %1946 = vmatpush1.bf16.msra.mxu0 %v1873
        %1947 = vmatprep.subr.bf16.mxu0 %v1878
        %1948 = vmatpush1.bf16.msra.mxu0 %v1877
        %1949 = vmatprep.subr.bf16.mxu0 %v1882
        %1950 = vmatpush1.bf16.msra.mxu0 %v1881
        %1951 = vmatprep.subr.bf16.mxu0 %v1886
        %1952 = vmatpush1.bf16.msra.mxu0 %v1885
        %1953 = vmatprep.mubr.bf16.mxu0 %v1823
        %1954 = vmatmul.mubr.bf16.gmra.mrb[0].mxu0 %v1822
        %v1955 = vpop.f32.mrb[0].mxu0
        %v1956 = vadd.f32 0.0, %v1955
        %v1957 = vpop.f32.mrb[0].mxu0
        %v1958 = vadd.f32 0.0, %v1957
        %v1959 = vpop.f32.mrb[0].mxu0
        %v1960 = vpop.f32.mrb[0].mxu0
        %1961 = vdwg.mxu0
        %1962 = vmatprep.subr.bf16.mxu0 %v1890
        %1963 = vmatpush1.bf16.msra.mxu0 %v1889
        %1964 = vmatprep.subr.bf16.mxu0 %v1894
        %1965 = vmatpush1.bf16.msra.mxu0 %v1893
        %1966 = vmatprep.subr.bf16.mxu0 %v1898
        %1967 = vmatpush1.bf16.msra.mxu0 %v1897
        %1968 = vmatprep.subr.bf16.mxu0 %v1902
        %1969 = vmatpush1.bf16.msra.mxu0 %v1901
        %1970 = vmatprep.subr.bf16.mxu0 %v1906
        %1971 = vmatpush1.bf16.msra.mxu0 %v1905
        %1972 = vmatprep.subr.bf16.mxu0 %v1910
        %1973 = vmatpush1.bf16.msra.mxu0 %v1909
        %1974 = vmatprep.subr.bf16.mxu0 %v1914
        %1975 = vmatpush1.bf16.msra.mxu0 %v1913
        %1976 = vmatprep.subr.bf16.mxu0 %v1918
        %1977 = vmatpush1.bf16.msra.mxu0 %v1917
        %1978 = vmatprep.subr.bf16.mxu0 0
        %1979 = vmatpush1.bf16.msra.mxu0 0
        %1980 = vmatprep.subr.bf16.mxu0 0
        %1981 = vmatpush1.bf16.msra.mxu0 0
        %1982 = vmatprep.subr.bf16.mxu0 0
        %1983 = vmatpush1.bf16.msra.mxu0 0
        %1984 = vmatprep.subr.bf16.mxu0 0
        %1985 = vmatpush1.bf16.msra.mxu0 0
        %1986 = vmatprep.subr.bf16.mxu0 0
        %1987 = vmatpush1.bf16.msra.mxu0 0
        %1988 = vmatprep.subr.bf16.mxu0 0
        %1989 = vmatpush1.bf16.msra.mxu0 0
        %1990 = vmatprep.subr.bf16.mxu0 0
        %1991 = vmatpush1.bf16.msra.mxu0 0
        %1992 = vmatprep.subr.bf16.mxu0 0
        %1993 = vmatpush1.bf16.msra.mxu0 0
        %1994 = vmatprep.mubr.bf16.mxu0 0
        %1995 = vmatmul.mubr.bf16.gmra.mrb[0].mxu0 %v1824
        %v1996 = vpop.f32.mrb[0].mxu0
        %v1997 = vadd.f32 %v1956, %v1996
        %v1998 = vpop.f32.mrb[0].mxu0
        %v1999 = vadd.f32 %v1958, %v1998
        %v2000 = vpop.f32.mrb[0].mxu0
        %v2001 = vpop.f32.mrb[0].mxu0
        %2002 = vdwg.mxu0
        %2003 = vmatprep.subr.bf16.mxu0 %v1828
        %2004 = vmatpush1.bf16.msra.mxu0 %v1827
        %2005 = vmatprep.subr.bf16.mxu0 %v1832
        %2006 = vmatpush1.bf16.msra.mxu0 %v1831
        %2007 = vmatprep.subr.bf16.mxu0 %v1836
        %2008 = vmatpush1.bf16.msra.mxu0 %v1835
        %2009 = vmatprep.subr.bf16.mxu0 %v1840
        %2010 = vmatpush1.bf16.msra.mxu0 %v1839
        %2011 = vmatprep.subr.bf16.mxu0 %v1844
        %2012 = vmatpush1.bf16.msra.mxu0 %v1843
        %2013 = vmatprep.subr.bf16.mxu0 %v1848
        %2014 = vmatpush1.bf16.msra.mxu0 %v1847
        %2015 = vmatprep.subr.bf16.mxu0 %v1852
        %2016 = vmatpush1.bf16.msra.mxu0 %v1851
        %2017 = vmatprep.subr.bf16.mxu0 %v1856
        %2018 = vmatpush1.bf16.msra.mxu0 %v1855
        %2019 = vmatprep.subr.bf16.mxu0 %v1860
        %2020 = vmatpush1.bf16.msra.mxu0 %v1859
        %2021 = vmatprep.subr.bf16.mxu0 %v1864
        %2022 = vmatpush1.bf16.msra.mxu0 %v1863
        %2023 = vmatprep.subr.bf16.mxu0 %v1868
        %2024 = vmatpush1.bf16.msra.mxu0 %v1867
        %2025 = vmatprep.subr.bf16.mxu0 %v1872
        %2026 = vmatpush1.bf16.msra.mxu0 %v1871
        %2027 = vmatprep.subr.bf16.mxu0 %v1876
        %2028 = vmatpush1.bf16.msra.mxu0 %v1875
        %2029 = vmatprep.subr.bf16.mxu0 %v1880
        %2030 = vmatpush1.bf16.msra.mxu0 %v1879
        %2031 = vmatprep.subr.bf16.mxu0 %v1884
        %2032 = vmatpush1.bf16.msra.mxu0 %v1883
        %2033 = vmatprep.subr.bf16.mxu0 %v1888
        %2034 = vmatpush1.bf16.msra.mxu0 %v1887
        %2035 = vmatprep.mubr.bf16.mxu0 %v1823
        %2036 = vmatmul.mubr.bf16.gmra.mrb[0].mxu0 %v1822
        %v2037 = vpop.f32.mrb[0].mxu0
        %v2038 = vadd.f32 0.0, %v2037
        %v2039 = vpop.f32.mrb[0].mxu0
        %v2040 = vadd.f32 0.0, %v2039
        %v2041 = vpop.f32.mrb[0].mxu0
        %v2042 = vpop.f32.mrb[0].mxu0
        %2043 = vdwg.mxu0
        %2044 = vmatprep.subr.bf16.mxu0 %v1892
        %2045 = vmatpush1.bf16.msra.mxu0 %v1891
        %2046 = vmatprep.subr.bf16.mxu0 %v1896
        %2047 = vmatpush1.bf16.msra.mxu0 %v1895
        %2048 = vmatprep.subr.bf16.mxu0 %v1900
        %2049 = vmatpush1.bf16.msra.mxu0 %v1899
        %2050 = vmatprep.subr.bf16.mxu0 %v1904
        %2051 = vmatpush1.bf16.msra.mxu0 %v1903
        %2052 = vmatprep.subr.bf16.mxu0 %v1908
        %2053 = vmatpush1.bf16.msra.mxu0 %v1907
        %2054 = vmatprep.subr.bf16.mxu0 %v1912
        %2055 = vmatpush1.bf16.msra.mxu0 %v1911
        %2056 = vmatprep.subr.bf16.mxu0 %v1916
        %2057 = vmatpush1.bf16.msra.mxu0 %v1915
        %2058 = vmatprep.subr.bf16.mxu0 %v1920
        %2059 = vmatpush1.bf16.msra.mxu0 %v1919
        %2060 = vmatprep.subr.bf16.mxu0 0
        %2061 = vmatpush1.bf16.msra.mxu0 0
        %2062 = vmatprep.subr.bf16.mxu0 0
        %2063 = vmatpush1.bf16.msra.mxu0 0
        %2064 = vmatprep.subr.bf16.mxu0 0
        %2065 = vmatpush1.bf16.msra.mxu0 0
        %2066 = vmatprep.subr.bf16.mxu0 0
        %2067 = vmatpush1.bf16.msra.mxu0 0
        %2068 = vmatprep.subr.bf16.mxu0 0
        %2069 = vmatpush1.bf16.msra.mxu0 0
        %2070 = vmatprep.subr.bf16.mxu0 0
        %2071 = vmatpush1.bf16.msra.mxu0 0
        %2072 = vmatprep.subr.bf16.mxu0 0
        %2073 = vmatpush1.bf16.msra.mxu0 0
        %2074 = vmatprep.subr.bf16.mxu0 0
        %2075 = vmatpush1.bf16.msra.mxu0 0
        %2076 = vmatprep.mubr.bf16.mxu0 0
        %2077 = vmatmul.mubr.bf16.gmra.mrb[0].mxu0 %v1824
        %v2078 = vpop.f32.mrb[0].mxu0
        %v2079 = vadd.f32 %v2038, %v2078
        %v2080 = vpop.f32.mrb[0].mxu0
        %v2081 = vadd.f32 %v2040, %v2080
        %v2082 = vpop.f32.mrb[0].mxu0
        %v2083 = vpop.f32.mrb[0].mxu0
        %2084 = vdwg.mxu0
        %v2085 = vadd.f32 %v1815, %v1997
        %v2086 = vadd.f32 %v1816, %v1999
        %v2087 = vadd.f32 %v1817, %v2079
        %v2088 = vadd.f32 %v1818, %v2081
        %2089 = vst [vmem:[#allocation2] sm:$0xff] %v2085
        %2090 = vst [vmem:[#allocation2 + $0x8] sm:$0xff] %v2086
        %2091 = vst [vmem:[#allocation2 + $0x10] sm:$0xff] %v2087
        %2092 = vst [vmem:[#allocation2 + $0x18] sm:$0xff] %v2088
        %p2093 = scmp.eq.s32.totalorder %s38, 1
        // Predicated region
        $region81: #{tpu_custom_call.1} parent=47 // pred_check
          %p2094 = pneg %p2093
        $region82: #{tpu_custom_call.1} parent=47 // pred_check_branch
          %2096 = sbr.rel (%p2094) target = $region84
        $region83: #{tpu_custom_call.1} parent=47 // pred_region
          %v2097 = vld [vmem:[%s468] sm:$0xf]
          %v2098 = vld [vmem:[%s477] sm:$0xf]
          %v2099 = vld [vmem:[%s486] sm:$0xf]
          %v2100 = vmul.f32 %v2098, %v2099
          %v2101 = vadd.f32 %v2097, %v2100
          %v2102 = vld [vmem:[#allocation2] sm:$0xff]
          %v2103 = vld [vmem:[#allocation2 + $0x8] sm:$0xff]
          %v2104 = vld [vmem:[#allocation2 + $0x10] sm:$0xff]
          %v2105 = vld [vmem:[#allocation2 + $0x18] sm:$0xff]
          %v2107 = vlaneseq
          %v2108 = vshrl.u32 %v2107, 7
          %v2109 = vsub.s32 0, %v2108
          %v2110 = vrot.slane %v2101, %v2109
          %v2111 = vlaneseq
          %v2112 = vshrl.u32 %v2111, 7
          %v2113 = vsub.s32 1, %v2112
          %v2114 = vrot.slane %v2101, %v2113
          %v2115 = vlaneseq
          %v2116 = vshrl.u32 %v2115, 7
          %v2117 = vsub.s32 2, %v2116
          %v2118 = vrot.slane %v2101, %v2117
          %v2119 = vlaneseq
          %v2120 = vshrl.u32 %v2119, 7
          %v2121 = vsub.s32 3, %v2120
          %v2122 = vrot.slane %v2101, %v2121
          %v2127 = vadd.f32 %v2102, %v2110
          %v2128 = vadd.f32 %v2103, %v2114
          %v2129 = vadd.f32 %v2104, %v2118
          %v2130 = vadd.f32 %v2105, %v2122
          %2131 = vst [vmem:[%s546] sm:$0xff] %v2127
          %2132 = vst [vmem:[%s546 + $0x8] sm:$0xff] %v2128
          %2133 = vst [vmem:[%s546 + $0x10] sm:$0xff] %v2129
          %2134 = vst [vmem:[%s546 + $0x18] sm:$0xff] %v2130
        $region84: #{tpu_custom_call.1} parent=47 // pred_fallthru
          _
        %s2135 = sand.u32 %s241, 1
        %s2136 = scalar_lea.sflag [#allocation5], %s2135
        %s2137 = sand.u32 %s241, 1
        %s2138 = smul.addr %s2137, 32
        %s2139 = scalar_lea.vmem [#allocation15], %s2138
        // Predicated region
        $region85: #{tpu_custom_call.1} parent=47 // pred_check
          %p2140 = pneg %p251
        $region86: #{tpu_custom_call.1} parent=47 // pred_check_branch
          %2142 = sbr.rel (%p2140) target = $region88
        $region87: #{tpu_custom_call.1} parent=47 // pred_region
          %s2143 = smul.u32 4, %s37
          %s2145 = ssub.s32 512, 512
          %2146 = vsyncadd %s2136, %s2145
          %s2147 = smul.addr %s2143, 128
          %s2148 = scalar_lea.hbm %s7, %s2147
          %s2150 = sshll.u32 %s2139, 4
          %s2151 = int_to_ptr.vmem [resolvable:$true] %s2150
          %2153 = dma.vmem_to_hbm [thread:$0]  %s2151, 512, %s2148, %s2136
        $region88: #{tpu_custom_call.1} parent=47 // pred_fallthru
          _
      $region48: #{tpu_custom_call.1} parent=5 // pred_fallthru
        _
      %p2154 = scmp.le.s32.totalorder 2, %s28
      // Predicated region
      $region89: #{tpu_custom_call.1} parent=5 // pred_check
        %p2155 = pneg %p2154
      $region90: #{tpu_custom_call.1} parent=5 // pred_check_branch
        %2157 = sbr.rel (%p2155) target = $region92
      $region91: #{tpu_custom_call.1} parent=5 // pred_region
        %s2158 = ssub.s32 %s28, 2
        // Predicated region
        $region93: #{tpu_custom_call.1} parent=91 // pred_check
          %p2159 = pneg %p257
        $region94: #{tpu_custom_call.1} parent=91 // pred_check_branch
          %2161 = sbr.rel (%p2159) target = $region96
        $region95: #{tpu_custom_call.1} parent=91 // pred_region
          %s2162 = sand.u32 %s242, 1
          %s2163 = scalar_lea.sflag [#allocation5], %s2162
          %s2164 = sand.u32 %s242, 1
          %s2165 = smul.addr %s2164, 32
          %s2166 = scalar_lea.vmem [#allocation15], %s2165
          %2167 = dma.done %s2163, 512
        $region96: #{tpu_custom_call.1} parent=91 // pred_fallthru
          _
      $region92: #{tpu_custom_call.1} parent=5 // pred_fallthru
        _
    $region6: #{tpu_custom_call.1} parent=1 // loop_footer
      %s32 = sadd.s32 1, %s28
    $region7: #{tpu_custom_call.1} parent=1 // loop_footer_branch
      %27 = sbr.rel target = $region3
    $region8: #{tpu_custom_call.1} parent=1 // loop_exit
      _
    %2168 = vsyncpa [#allocation4], 1
    %s2169 = scalar_lea.sflag [#allocation4], 1
    %2170 = vsyncpa %s2169, 1
    %2171 = vsyncpa [#allocation7], 1
    %s2172 = scalar_lea.sflag [#allocation7], 1
    %2173 = vsyncpa %s2172, 1
    %2174 = vsyncpa [#allocation10], 1
    %s2175 = scalar_lea.sflag [#allocation10], 1
    %2176 = vsyncpa %s2175, 1
    %2177 = vsyncpa [#allocation13], 1
    %s2178 = scalar_lea.sflag [#allocation13], 1
    %2179 = vsyncpa %s2178, 1
    %2180 = vsyncpa [#allocation5], 1
    %s2181 = scalar_lea.sflag [#allocation5], 1
    %2182 = vsyncpa %s2181, 1

</llo_original>
